<compile_context>
chip_gen: v6e
topology: v6e:2x2x1
jax: 0.10.0
libtpu: 0.0.40
codegen_flags: <defaults>
</compile_context>

<pallas_src>
import functools

import numpy as np
import jax
import jax.numpy as jnp
from jax.experimental import pallas as pl
from jax.experimental.pallas import tpu as pltpu

ALPHA = 4.2
C_CONST = 0.00046
VALUE_RANGE = 1.0

# Deterministic module buffer (nn.Module __init__ registers this constant).
_YIQ = ((0.299, 0.587, 0.114),
        (0.596, -0.274, -0.322),
        (0.211, -0.523, 0.312))


def _round_up(v, m):
    return (v + m - 1) // m * m


def _tpu_params():
    """(vmem_capacity_bytes, num_tensorcores) with conservative fallbacks."""
    vmem = 64 * 1024 * 1024
    cores = 2
    try:
        info = pltpu.get_tpu_info()
        vmem = int(getattr(info, "vmem_capacity_bytes", vmem))
        for attr in ("num_tensorcores", "tensorcore_count", "num_cores",
                     "core_count", "cores_per_chip"):
            v = getattr(info, attr, None)
            if isinstance(v, int) and v > 0:
                cores = v
                break
    except Exception:
        pass
    try:
        kind = jax.devices()[0].device_kind.lower()
        # lite parts (v5e / v6e) have a single TensorCore per device.
        if "lite" in kind or "v5e" in kind or "v6e" in kind:
            cores = 1
    except Exception:
        pass
    return vmem, max(1, min(2, cores))


# ----------------------------------------------------------------------------
# Pallas kernel
# ----------------------------------------------------------------------------
def _haarpsi_kernel(x_ref, y_ref, mask_ref, o_ref, *, bh, bw, hp, ws, c, alpha):
    # x_ref / y_ref: (1, 3, bh*hp, Wp) pooled RGB slabs.  Image (mh, mw) occupies
    #   rows [mh*hp+3, mh*hp+3+h2) and cols [mw*ws+3, mw*ws+3+w2); everything
    #   else is zero.  hp >= h2+7 (multiple of 8), ws = w2+7, Wp multiple of 128.
    # mask_ref: (1, bh*hp, Wp) f32 {0,1} validity mask of the data pixels.
    # o_ref: (bh*bw, 1, 1) per-image HaarPSI (pad slots produce finite junk).
    BHp = bh * hp
    Wp = x_ref.shape[-1]

    # Per-scale normalizations folded into c:  sim(a/k, b/k) == sim_{c*k^2}(a,b)
    c2 = 4.0 * c      # scale 2 responses (x2 unnormalized)
    c4 = 16.0 * c     # scale 4 responses (x4 unnormalized)
    c16 = 16.0 * c    # chroma 2x2 sums   (x4 unnormalized)
    a_half = 0.5 * alpha   # folds the "sum of 2 sims / 2" into the sigmoid

    def shr(t, d):  # out[i, j] = t[i + d, j]   (sublane rotate, XLU)
        return pltpu.roll(t, (-d) % BHp, axis=0)

    def shc(t, d):  # out[i, j] = t[i, j + d]   (lane rotate, XLU)
        return pltpu.roll(t, (-d) % Wp, axis=1)

    def sim(a, b, cc):
        return (2.0 * a * b + cc) / (a * a + b * b + cc)

    def sigm_half(t):      # sigmoid(alpha * t / 2)
        return 1.0 / (1.0 + jnp.exp(-a_half * t))

    xr, xg, xb = x_ref[0, 0], x_ref[0, 1], x_ref[0, 2]
    yr, yg, yb = y_ref[0, 0], y_ref[0, 1], y_ref[0, 2]

    # --- chromatic (I, Q) similarity first so the I/Q temporaries die early ----
    def chroma(r, g, b, row):
        w0, w1, w2c = _YIQ[row]
        p = w0 * r + w1 * g + w2c * b          # zero pad stays zero (linear map)
        s = p + shc(p, 1)                      # 1x2 box
        return jnp.abs(s + shr(s, 1))          # unnormalized 2x2 sum (c folded)

    h_c_half = 0.5 * sigm_half(
        sim(chroma(xr, xg, xb, 1), chroma(yr, yg, yb, 1), c16) +
        sim(chroma(xr, xg, xb, 2), chroma(yr, yg, yb, 2), c16))

    yw0, yw1, yw2 = _YIQ[0]
    xY = yw0 * xr + yw1 * xg + yw2 * xb
    yY = yw0 * yr + yw1 * yg + yw2 * yb

    # Box sums B_{k x m}[i, j] = sum_{a<k, b<m} P[i+a, j+b]; Haar responses are
    # differences of shifted box sums (all normalizations folded into c / num-den).

    # ===== chain A: horizontal responses (row box-sum tree, column diffs) =====
    def gh4(S4):                               # S4[i,j] = sum of 4 rows below (i,j)
        a = shr(S4, -1)
        box = a + shc(a, -1)                   # 4x2 box anchored at (-1, -1)
        return jnp.abs(box - shc(box, 2))

    def gh8(S8):
        a = shr(S8, -3)
        v = a + shc(a, -1)
        box = v + shc(v, -2)                   # 8x4 box anchored at (-3, -3)
        return jnp.abs(box - shc(box, 4))

    S2x, S2y = xY + shr(xY, 1), yY + shr(yY, 1)
    acc_h = sim(jnp.abs(S2x - shc(S2x, 1)), jnp.abs(S2y - shc(S2y, 1)), c2)
    S4x, S4y = S2x + shr(S2x, 2), S2y + shr(S2y, 2)
    acc_h = acc_h + sim(gh4(S4x), gh4(S4y), c4)
    S8x, S8y = S4x + shr(S4x, 4), S4y + shr(S4y, 4)
    w_h = jnp.maximum(gh8(S8x), gh8(S8y)) * mask_ref[0]   # mask -> pad adds 0
    num = (sigm_half(acc_h) + h_c_half) * w_h
    den = w_h

    # ===== chain B: vertical responses (column box-sum tree, row diffs) =======
    def gv4(C4):                               # C4[i,j] = sum of 4 cols right of (i,j)
        a = shc(C4, -1)
        box = a + shr(a, -1)                   # 2x4 box anchored at (-1, -1)
        return jnp.abs(box - shr(box, 2))

    def gv8(C8):
        a = shc(C8, -3)
        v = a + shr(a, -1)
        box = v + shr(v, -2)                   # 4x8 box anchored at (-3, -3)
        return jnp.abs(box - shr(box, 4))

    C2x, C2y = xY + shc(xY, 1), yY + shc(yY, 1)
    acc_v = sim(jnp.abs(C2x - shr(C2x, 1)), jnp.abs(C2y - shr(C2y, 1)), c2)
    C4x, C4y = C2x + shc(C2x, 2), C2y + shc(C2y, 2)
    acc_v = acc_v + sim(gv4(C4x), gv4(C4y), c4)
    C8x, C8y = C4x + shc(C4x, 4), C4y + shc(C4y, 4)
    w_v = jnp.maximum(gv8(C8x), gv8(C8y)) * mask_ref[0]
    num = num + (sigm_half(acc_v) + h_c_half) * w_v
    den = den + w_v                            # true den = 1.5*(w_h+w_v), applied below

    # --- per-image reduction: one sublane pass per image-row, tiny lane sums ---
    inv_alpha = 1.0 / alpha
    for mh in range(bh):
        rs = slice(mh * hp, (mh + 1) * hp)              # sublane-aligned
        nrow = jnp.sum(num[rs], axis=0, keepdims=True)  # (1, Wp)
        drow = jnp.sum(den[rs], axis=0, keepdims=True)
        for mw in range(bw):
            cs = slice(mw * ws, (mw + 1) * ws)
            ns = jnp.sum(nrow[:, cs], keepdims=True)    # (1, 1)
            ds = jnp.sum(drow[:, cs], keepdims=True)
            # 1e-30 + clip: pad batch slots (all-zero images) stay finite.
            hpsi = jnp.clip(ns / (1.5 * ds + 1e-30), 1e-6, 1.0 - 1e-6)
            o_ref[mh * bw + mw] = (jnp.log(hpsi / (1.0 - hpsi)) * inv_alpha) ** 2


# ----------------------------------------------------------------------------
# Wrapper (glue): pooling, packing / padding, pallas_call, reduction
# ----------------------------------------------------------------------------
def haarpsi_pallas(x, y, value_range=VALUE_RANGE, c=C_CONST, alpha=ALPHA):
    """Per-image HaarPSI, inputs (N, 3, H, W) with even H, W."""
    x = x.astype(jnp.float32)
    y = y.astype(jnp.float32)
    n, ch, h, w = x.shape
    assert ch == 3 and h % 2 == 0 and w % 2 == 0, "demo assumes 3 channels, even H/W"
    h2, w2 = h // 2, w // 2
    ws = w2 + 7                       # per-image lane slot (>=7 zero-col gap)
    hp = _round_up(h2 + 7, 8)         # per-image sublane slot (>=7 zero-row gap)

    vmem_cap, num_tc = _tpu_params()
    # VMEM cost per row-of-images: inputs (2 in x 2 buf x 3 ch x 4B = 48B/elem),
    # mask (8B/elem double-buffered) and ~16-18 live f32 full-slab temporaries.
    ws_pad = 128 if ws <= 128 else _round_up(ws, 128)
    bytes_per_img_row = hp * ws_pad * 144
    budget = int(vmem_cap * 0.6)
    bh_cap = max(1, budget // bytes_per_img_row)
    bw_max = max(1, 128 // ws) if ws <= 128 else 1
    cap_imgs = bh_cap * bw_max

    # Grid steps: at least ceil(n / cap) for VMEM; on megacore parts round the
    # step count up to a multiple of the TC count so "parallel" stays balanced;
    # single-TC parts keep few, fat steps.
    g = max(1, -(-n // cap_imgs))
    if n >= num_tc:
        g = -(-max(g, num_tc) // num_tc) * num_tc
    bt = -(-n // g)
    bw = min(bw_max, bt)              # images packed along the 128-lane axis
    bh = min(max(1, -(-bt // bw)), bh_cap)   # image rows stacked along sublanes
    bt = bh * bw
    g = -(-n // bt)
    npad = g * bt - n

    Wp = _round_up(bw * ws, 128)
    BHp = bh * hp

    def prep(t):
        # 2x2 stride-2 average pool, then pack bt = bh*bw images per grid step:
        # bh along sublanes (slot hp) and bw along lanes (slot ws), one fused pad.
        p = t.reshape(n, 3, h2, 2, w2, 2).mean(axis=(3, 5))
        if npad:
            p = jnp.pad(p, ((0, npad), (0, 0), (0, 0), (0, 0)))
        p = p.reshape(g, bh, bw, 3, h2, w2).transpose(0, 3, 1, 4, 2, 5)
        p = jnp.pad(p, ((0, 0), (0, 0), (0, 0),
                        (3, hp - 3 - h2), (0, 0), (3, ws - 3 - w2)))
        p = p.reshape(g, 3, BHp, bw * ws)
        if Wp > bw * ws:
            p = jnp.pad(p, ((0, 0), (0, 0), (0, 0), (0, Wp - bw * ws)))
        return p

    xp = prep(x)
    yp = prep(y)

    mask_np = np.zeros((1, BHp, Wp), np.float32)
    for mh in range(bh):
        for mw in range(bw):
            mask_np[0, mh * hp + 3:mh * hp + 3 + h2,
                    mw * ws + 3:mw * ws + 3 + w2] = 1.0
    mask = jnp.asarray(mask_np)

    kern = functools.partial(_haarpsi_kernel, bh=bh, bw=bw, hp=hp, ws=ws,
                             c=c * value_range ** 2, alpha=alpha)
    out = pl.pallas_call(
        kern,
        out_shape=jax.ShapeDtypeStruct((g * bt, 1, 1), jnp.float32),
        grid=(g,),
        in_specs=[
            pl.BlockSpec((1, 3, BHp, Wp), lambda i: (i, 0, 0, 0)),
            pl.BlockSpec((1, 3, BHp, Wp), lambda i: (i, 0, 0, 0)),
            pl.BlockSpec((1, BHp, Wp), lambda i: (0, 0, 0)),
        ],
        out_specs=pl.BlockSpec((bt, 1, 1), lambda i: (i, 0, 0)),
        compiler_params=pltpu.CompilerParams(
            dimension_semantics=("parallel",),
            vmem_limit_bytes=int(vmem_cap * 0.8),
        ),
    )(xp, yp, mask)
    return out[:n, 0, 0]


def haarpsi_module(x, y, reduction="mean"):
    per_batch = haarpsi_pallas(x, y)
    if reduction == "mean":
        return jnp.mean(per_batch)
    if reduction == "sum":
        return jnp.sum(per_batch)
    return per_batch


# ----------------------------------------------------------------------------
# Pure-JAX reference (mirrors the PyTorch code) for validation
# ----------------------------------------------------------------------------
def _haar_kernel_jnp(size):
    sign = jnp.repeat(jnp.array([1.0, -1.0], jnp.float32), size // 2)
    return jnp.outer(jnp.ones((size,), jnp.float32) / size, sign)


def reference_haarpsi(x, y, value_range=VALUE_RANGE, n_kernels=3,
                      c=C_CONST, alpha=ALPHA):
    x = x.astype(jnp.float32)
    y = y.astype(jnp.float32)
    n, _, h, w = x.shape
    h2, w2 = h // 2, w // 2

    def pool2(t):
        return t.reshape(n, 3, h2, 2, w2, 2).mean(axis=(3, 5))

    x = pool2(x)
    y = pool2(y)
    yiq = jnp.array(_YIQ, jnp.float32)
    x = jnp.einsum("oc,nchw->nohw", yiq, x)
    y = jnp.einsum("oc,nchw->nohw", yiq, y)

    c = c * value_range ** 2

    def conv(img, kern):
        return jax.lax.conv_general_dilated(
            img, kern, window_strides=(1, 1), padding="VALID",
            dimension_numbers=("NCHW", "OIHW", "NCHW"))

    g_xy = []
    for j in range(1, n_kernels + 1):
        ks = 2 ** j
        half = ks // 2
        k2d = _haar_kernel_jnp(ks)
        kern = jnp.stack([k2d, k2d.T])[:, None]
        padw = ((0, 0), (0, 0), (half - 1, half), (half - 1, half))
        gx = jnp.abs(conv(jnp.pad(x[:, :1], padw), kern))
        gy = jnp.abs(conv(jnp.pad(y[:, :1], padw), kern))
        g_xy.append((gx, gy))

    gs = [(2.0 * gx * gy + c) / (gx ** 2 + gy ** 2 + c) for gx, gy in g_xy[:-1]]
    ls = sum(gs) / 2.0
    gx, gy = g_xy[-1]
    wt = jnp.maximum(gx, gy)

    def avgpool_2x2_s1(t):
        tp = jnp.pad(t, ((0, 0), (0, 0), (0, 1), (0, 1)))
        return (tp[:, :, :-1, :-1] + tp[:, :, :-1, 1:]
                + tp[:, :, 1:, :-1] + tp[:, :, 1:, 1:]) / 4.0

    mx = jnp.abs(avgpool_2x2_s1(x[:, 1:]))
    my = jnp.abs(avgpool_2x2_s1(y[:, 1:]))
    cs = (2.0 * mx * my + c) / (mx ** 2 + my ** 2 + c)
    ls = jnp.concatenate([ls, cs.mean(1, keepdims=True)], axis=1)
    wt = jnp.concatenate([wt, wt.mean(1, keepdims=True)], axis=1)

    hsv = jax.nn.sigmoid(ls * alpha)
    hpsi = (hsv * wt).sum((-1, -2, -3)) / wt.sum((-1, -2, -3))
    return (jnp.log(hpsi / (1.0 - hpsi)) / alpha) ** 2


# ----------------------------------------------------------------------------
if __name__ == "__main__":
    key = jax.random.PRNGKey(0)
    kx1, ky1, kx2, ky2 = jax.random.split(key, 4)

    # case 1: batch 2, 16x16
    x1 = jax.random.uniform(kx1, (2, 3, 16, 16), dtype=jnp.float32)
    y1 = jax.random.uniform(ky1, (2, 3, 16, 16), dtype=jnp.float32)
    got1 = jax.block_until_ready(haarpsi_pallas(x1, y1))
    ref1 = jax.block_until_ready(reference_haarpsi(x1, y1))
    np.testing.assert_allclose(np.asarray(got1), np.asarray(ref1),
                               rtol=2e-4, atol=2e-5)

    # case 2: batch 3, 20x24 -> lane-packed images + possibly one pad slot
    x2 = jax.random.uniform(kx2, (3, 3, 20, 24), dtype=jnp.float32)
    y2 = jax.random.uniform(ky2, (3, 3, 20, 24), dtype=jnp.float32)
    got2 = jax.block_until_ready(haarpsi_pallas(x2, y2))
    ref2 = jax.block_until_ready(reference_haarpsi(x2, y2))
    np.testing.assert_allclose(np.asarray(got2), np.asarray(ref2),
                               rtol=2e-4, atol=2e-5)

    loss = jax.block_until_ready(haarpsi_module(x1, y1, reduction="mean"))
    np.testing.assert_allclose(float(loss), float(np.asarray(ref1).mean()),
                               rtol=2e-4, atol=2e-5)

    print("KERNEL_OK")
</pallas_src>

<mosaic_0001>
module attributes {stable_mosaic.version = 11 : i64} {
  func.func @_haarpsi_kernel(%arg0: i32, %arg1: memref<1x3x16x128xf32, #tpu.memory_space<vmem>>, %arg2: memref<1x3x16x128xf32, #tpu.memory_space<vmem>>, %arg3: memref<1x16x128xf32, #tpu.memory_space<vmem>>, %arg4: memref<1x1x1xf32, #tpu.memory_space<vmem>>) attributes {dimension_semantics = [#tpu.dimension_semantics<parallel>], iteration_bounds = array<i64: 2>, scalar_prefetch = 0 : i64, scratch_operands = 0 : i64, tpu.core_type = #tpu.core_type<tc>, window_params = [{transform_indices = @transform_0, window_bounds = array<i64: 1, 3, 16, 128>}, {transform_indices = @transform_1, window_bounds = array<i64: 1, 3, 16, 128>}, {pipeline_mode = #tpu.pipeline_mode<synchronous>, transform_indices = @transform_2, window_bounds = array<i64: 1, 16, 128>}, {transform_indices = @transform_3, window_bounds = array<i64: 1, 1, 1>}]} {
    %c0 = arith.constant 0 : index
    %c0_0 = arith.constant 0 : index
    %c0_1 = arith.constant 0 : index
    %c0_2 = arith.constant 0 : index
    %0 = vector.load %arg1[%c0, %c0_0, %c0_1, %c0_2] : memref<1x3x16x128xf32, #tpu.memory_space<vmem>>, vector<1x1x16x128xf32>
    %1 = vector.shape_cast %0 : vector<1x1x16x128xf32> to vector<16x128xf32>
    %c0_3 = arith.constant 0 : index
    %c1 = arith.constant 1 : index
    %c0_4 = arith.constant 0 : index
    %c0_5 = arith.constant 0 : index
    %2 = vector.load %arg1[%c0_3, %c1, %c0_4, %c0_5] : memref<1x3x16x128xf32, #tpu.memory_space<vmem>>, vector<1x1x16x128xf32>
    %3 = vector.shape_cast %2 : vector<1x1x16x128xf32> to vector<16x128xf32>
    %c0_6 = arith.constant 0 : index
    %c2 = arith.constant 2 : index
    %c0_7 = arith.constant 0 : index
    %c0_8 = arith.constant 0 : index
    %4 = vector.load %arg1[%c0_6, %c2, %c0_7, %c0_8] : memref<1x3x16x128xf32, #tpu.memory_space<vmem>>, vector<1x1x16x128xf32>
    %5 = vector.shape_cast %4 : vector<1x1x16x128xf32> to vector<16x128xf32>
    %c0_9 = arith.constant 0 : index
    %c0_10 = arith.constant 0 : index
    %c0_11 = arith.constant 0 : index
    %c0_12 = arith.constant 0 : index
    %6 = vector.load %arg2[%c0_9, %c0_10, %c0_11, %c0_12] : memref<1x3x16x128xf32, #tpu.memory_space<vmem>>, vector<1x1x16x128xf32>
    %7 = vector.shape_cast %6 : vector<1x1x16x128xf32> to vector<16x128xf32>
    %c0_13 = arith.constant 0 : index
    %c1_14 = arith.constant 1 : index
    %c0_15 = arith.constant 0 : index
    %c0_16 = arith.constant 0 : index
    %8 = vector.load %arg2[%c0_13, %c1_14, %c0_15, %c0_16] : memref<1x3x16x128xf32, #tpu.memory_space<vmem>>, vector<1x1x16x128xf32>
    %9 = vector.shape_cast %8 : vector<1x1x16x128xf32> to vector<16x128xf32>
    %c0_17 = arith.constant 0 : index
    %c2_18 = arith.constant 2 : index
    %c0_19 = arith.constant 0 : index
    %c0_20 = arith.constant 0 : index
    %10 = vector.load %arg2[%c0_17, %c2_18, %c0_19, %c0_20] : memref<1x3x16x128xf32, #tpu.memory_space<vmem>>, vector<1x1x16x128xf32>
    %11 = vector.shape_cast %10 : vector<1x1x16x128xf32> to vector<16x128xf32>
    %cst = arith.constant 5.960000e-01 : f32
    %12 = vector.broadcast %cst : f32 to vector<16x128xf32>
    %13 = arith.mulf %12, %1 : vector<16x128xf32>
    %cst_21 = arith.constant -2.740000e-01 : f32
    %14 = vector.broadcast %cst_21 : f32 to vector<16x128xf32>
    %15 = arith.mulf %14, %3 : vector<16x128xf32>
    %16 = arith.addf %13, %15 : vector<16x128xf32>
    %cst_22 = arith.constant -3.220000e-01 : f32
    %17 = vector.broadcast %cst_22 : f32 to vector<16x128xf32>
    %18 = arith.mulf %17, %5 : vector<16x128xf32>
    %19 = arith.addf %16, %18 : vector<16x128xf32>
    %c127_i32 = arith.constant 127 : i32
    %20 = tpu.dynamic_rotate %19 by %c127_i32 dim 1 : vector<16x128xf32>, i32 -> vector<16x128xf32>
    %21 = arith.addf %19, %20 : vector<16x128xf32>
    %c15_i32 = arith.constant 15 : i32
    %22 = tpu.dynamic_rotate %21 by %c15_i32 dim 0 : vector<16x128xf32>, i32 -> vector<16x128xf32>
    %23 = arith.addf %21, %22 : vector<16x128xf32>
    %24 = math.absf %23 : vector<16x128xf32>
    %cst_23 = arith.constant 5.960000e-01 : f32
    %25 = vector.broadcast %cst_23 : f32 to vector<16x128xf32>
    %26 = arith.mulf %25, %7 : vector<16x128xf32>
    %cst_24 = arith.constant -2.740000e-01 : f32
    %27 = vector.broadcast %cst_24 : f32 to vector<16x128xf32>
    %28 = arith.mulf %27, %9 : vector<16x128xf32>
    %29 = arith.addf %26, %28 : vector<16x128xf32>
    %cst_25 = arith.constant -3.220000e-01 : f32
    %30 = vector.broadcast %cst_25 : f32 to vector<16x128xf32>
    %31 = arith.mulf %30, %11 : vector<16x128xf32>
    %32 = arith.addf %29, %31 : vector<16x128xf32>
    %c127_i32_26 = arith.constant 127 : i32
    %33 = tpu.dynamic_rotate %32 by %c127_i32_26 dim 1 : vector<16x128xf32>, i32 -> vector<16x128xf32>
    %34 = arith.addf %32, %33 : vector<16x128xf32>
    %c15_i32_27 = arith.constant 15 : i32
    %35 = tpu.dynamic_rotate %34 by %c15_i32_27 dim 0 : vector<16x128xf32>, i32 -> vector<16x128xf32>
    %36 = arith.addf %34, %35 : vector<16x128xf32>
    %37 = math.absf %36 : vector<16x128xf32>
    %cst_28 = arith.constant 2.000000e+00 : f32
    %38 = vector.broadcast %cst_28 : f32 to vector<16x128xf32>
    %39 = arith.mulf %38, %24 : vector<16x128xf32>
    %40 = arith.mulf %39, %37 : vector<16x128xf32>
    %cst_29 = arith.constant 7.360000e-03 : f32
    %41 = vector.broadcast %cst_29 : f32 to vector<16x128xf32>
    %42 = arith.addf %40, %41 : vector<16x128xf32>
    %43 = arith.mulf %24, %24 : vector<16x128xf32>
    %44 = arith.mulf %37, %37 : vector<16x128xf32>
    %45 = arith.addf %43, %44 : vector<16x128xf32>
    %cst_30 = arith.constant 7.360000e-03 : f32
    %46 = vector.broadcast %cst_30 : f32 to vector<16x128xf32>
    %47 = arith.addf %45, %46 : vector<16x128xf32>
    %48 = arith.divf %42, %47 : vector<16x128xf32>
    %cst_31 = arith.constant 2.110000e-01 : f32
    %49 = vector.broadcast %cst_31 : f32 to vector<16x128xf32>
    %50 = arith.mulf %49, %1 : vector<16x128xf32>
    %cst_32 = arith.constant -5.230000e-01 : f32
    %51 = vector.broadcast %cst_32 : f32 to vector<16x128xf32>
    %52 = arith.mulf %51, %3 : vector<16x128xf32>
    %53 = arith.addf %50, %52 : vector<16x128xf32>
    %cst_33 = arith.constant 3.120000e-01 : f32
    %54 = vector.broadcast %cst_33 : f32 to vector<16x128xf32>
    %55 = arith.mulf %54, %5 : vector<16x128xf32>
    %56 = arith.addf %53, %55 : vector<16x128xf32>
    %c127_i32_34 = arith.constant 127 : i32
    %57 = tpu.dynamic_rotate %56 by %c127_i32_34 dim 1 : vector<16x128xf32>, i32 -> vector<16x128xf32>
    %58 = arith.addf %56, %57 : vector<16x128xf32>
    %c15_i32_35 = arith.constant 15 : i32
    %59 = tpu.dynamic_rotate %58 by %c15_i32_35 dim 0 : vector<16x128xf32>, i32 -> vector<16x128xf32>
    %60 = arith.addf %58, %59 : vector<16x128xf32>
    %61 = math.absf %60 : vector<16x128xf32>
    %cst_36 = arith.constant 2.110000e-01 : f32
    %62 = vector.broadcast %cst_36 : f32 to vector<16x128xf32>
    %63 = arith.mulf %62, %7 : vector<16x128xf32>
    %cst_37 = arith.constant -5.230000e-01 : f32
    %64 = vector.broadcast %cst_37 : f32 to vector<16x128xf32>
    %65 = arith.mulf %64, %9 : vector<16x128xf32>
    %66 = arith.addf %63, %65 : vector<16x128xf32>
    %cst_38 = arith.constant 3.120000e-01 : f32
    %67 = vector.broadcast %cst_38 : f32 to vector<16x128xf32>
    %68 = arith.mulf %67, %11 : vector<16x128xf32>
    %69 = arith.addf %66, %68 : vector<16x128xf32>
    %c127_i32_39 = arith.constant 127 : i32
    %70 = tpu.dynamic_rotate %69 by %c127_i32_39 dim 1 : vector<16x128xf32>, i32 -> vector<16x128xf32>
    %71 = arith.addf %69, %70 : vector<16x128xf32>
    %c15_i32_40 = arith.constant 15 : i32
    %72 = tpu.dynamic_rotate %71 by %c15_i32_40 dim 0 : vector<16x128xf32>, i32 -> vector<16x128xf32>
    %73 = arith.addf %71, %72 : vector<16x128xf32>
    %74 = math.absf %73 : vector<16x128xf32>
    %cst_41 = arith.constant 2.000000e+00 : f32
    %75 = vector.broadcast %cst_41 : f32 to vector<16x128xf32>
    %76 = arith.mulf %75, %61 : vector<16x128xf32>
    %77 = arith.mulf %76, %74 : vector<16x128xf32>
    %cst_42 = arith.constant 7.360000e-03 : f32
    %78 = vector.broadcast %cst_42 : f32 to vector<16x128xf32>
    %79 = arith.addf %77, %78 : vector<16x128xf32>
    %80 = arith.mulf %61, %61 : vector<16x128xf32>
    %81 = arith.mulf %74, %74 : vector<16x128xf32>
    %82 = arith.addf %80, %81 : vector<16x128xf32>
    %cst_43 = arith.constant 7.360000e-03 : f32
    %83 = vector.broadcast %cst_43 : f32 to vector<16x128xf32>
    %84 = arith.addf %82, %83 : vector<16x128xf32>
    %85 = arith.divf %79, %84 : vector<16x128xf32>
    %86 = arith.addf %48, %85 : vector<16x128xf32>
    %cst_44 = arith.constant -2.100000e+00 : f32
    %87 = vector.broadcast %cst_44 : f32 to vector<16x128xf32>
    %88 = arith.mulf %87, %86 : vector<16x128xf32>
    %89 = math.exp %88 : vector<16x128xf32>
    %cst_45 = arith.constant 1.000000e+00 : f32
    %90 = vector.broadcast %cst_45 : f32 to vector<16x128xf32>
    %91 = arith.addf %90, %89 : vector<16x128xf32>
    %cst_46 = arith.constant 1.000000e+00 : f32
    %92 = vector.broadcast %cst_46 : f32 to vector<16x128xf32>
    %93 = arith.divf %92, %91 : vector<16x128xf32>
    %cst_47 = arith.constant 5.000000e-01 : f32
    %94 = vector.broadcast %cst_47 : f32 to vector<16x128xf32>
    %95 = arith.mulf %94, %93 : vector<16x128xf32>
    %cst_48 = arith.constant 2.990000e-01 : f32
    %96 = vector.broadcast %cst_48 : f32 to vector<16x128xf32>
    %97 = arith.mulf %96, %1 : vector<16x128xf32>
    %cst_49 = arith.constant 5.870000e-01 : f32
    %98 = vector.broadcast %cst_49 : f32 to vector<16x128xf32>
    %99 = arith.mulf %98, %3 : vector<16x128xf32>
    %100 = arith.addf %97, %99 : vector<16x128xf32>
    %cst_50 = arith.constant 1.140000e-01 : f32
    %101 = vector.broadcast %cst_50 : f32 to vector<16x128xf32>
    %102 = arith.mulf %101, %5 : vector<16x128xf32>
    %103 = arith.addf %100, %102 : vector<16x128xf32>
    %cst_51 = arith.constant 2.990000e-01 : f32
    %104 = vector.broadcast %cst_51 : f32 to vector<16x128xf32>
    %105 = arith.mulf %104, %7 : vector<16x128xf32>
    %cst_52 = arith.constant 5.870000e-01 : f32
    %106 = vector.broadcast %cst_52 : f32 to vector<16x128xf32>
    %107 = arith.mulf %106, %9 : vector<16x128xf32>
    %108 = arith.addf %105, %107 : vector<16x128xf32>
    %cst_53 = arith.constant 1.140000e-01 : f32
    %109 = vector.broadcast %cst_53 : f32 to vector<16x128xf32>
    %110 = arith.mulf %109, %11 : vector<16x128xf32>
    %111 = arith.addf %108, %110 : vector<16x128xf32>
    %c15_i32_54 = arith.constant 15 : i32
    %112 = tpu.dynamic_rotate %103 by %c15_i32_54 dim 0 : vector<16x128xf32>, i32 -> vector<16x128xf32>
    %113 = arith.addf %103, %112 : vector<16x128xf32>
    %c15_i32_55 = arith.constant 15 : i32
    %114 = tpu.dynamic_rotate %111 by %c15_i32_55 dim 0 : vector<16x128xf32>, i32 -> vector<16x128xf32>
    %115 = arith.addf %111, %114 : vector<16x128xf32>
    %c127_i32_56 = arith.constant 127 : i32
    %116 = tpu.dynamic_rotate %113 by %c127_i32_56 dim 1 : vector<16x128xf32>, i32 -> vector<16x128xf32>
    %117 = arith.subf %113, %116 : vector<16x128xf32>
    %118 = math.absf %117 : vector<16x128xf32>
    %c127_i32_57 = arith.constant 127 : i32
    %119 = tpu.dynamic_rotate %115 by %c127_i32_57 dim 1 : vector<16x128xf32>, i32 -> vector<16x128xf32>
    %120 = arith.subf %115, %119 : vector<16x128xf32>
    %121 = math.absf %120 : vector<16x128xf32>
    %cst_58 = arith.constant 2.000000e+00 : f32
    %122 = vector.broadcast %cst_58 : f32 to vector<16x128xf32>
    %123 = arith.mulf %122, %118 : vector<16x128xf32>
    %124 = arith.mulf %123, %121 : vector<16x128xf32>
    %cst_59 = arith.constant 1.840000e-03 : f32
    %125 = vector.broadcast %cst_59 : f32 to vector<16x128xf32>
    %126 = arith.addf %124, %125 : vector<16x128xf32>
    %127 = arith.mulf %118, %118 : vector<16x128xf32>
    %128 = arith.mulf %121, %121 : vector<16x128xf32>
    %129 = arith.addf %127, %128 : vector<16x128xf32>
    %cst_60 = arith.constant 1.840000e-03 : f32
    %130 = vector.broadcast %cst_60 : f32 to vector<16x128xf32>
    %131 = arith.addf %129, %130 : vector<16x128xf32>
    %132 = arith.divf %126, %131 : vector<16x128xf32>
    %c14_i32 = arith.constant 14 : i32
    %133 = tpu.dynamic_rotate %113 by %c14_i32 dim 0 : vector<16x128xf32>, i32 -> vector<16x128xf32>
    %134 = arith.addf %113, %133 : vector<16x128xf32>
    %c14_i32_61 = arith.constant 14 : i32
    %135 = tpu.dynamic_rotate %115 by %c14_i32_61 dim 0 : vector<16x128xf32>, i32 -> vector<16x128xf32>
    %136 = arith.addf %115, %135 : vector<16x128xf32>
    %c1_i32 = arith.constant 1 : i32
    %137 = tpu.dynamic_rotate %134 by %c1_i32 dim 0 : vector<16x128xf32>, i32 -> vector<16x128xf32>
    %c1_i32_62 = arith.constant 1 : i32
    %138 = tpu.dynamic_rotate %137 by %c1_i32_62 dim 1 : vector<16x128xf32>, i32 -> vector<16x128xf32>
    %139 = arith.addf %137, %138 : vector<16x128xf32>
    %c126_i32 = arith.constant 126 : i32
    %140 = tpu.dynamic_rotate %139 by %c126_i32 dim 1 : vector<16x128xf32>, i32 -> vector<16x128xf32>
    %141 = arith.subf %139, %140 : vector<16x128xf32>
    %142 = math.absf %141 : vector<16x128xf32>
    %c1_i32_63 = arith.constant 1 : i32
    %143 = tpu.dynamic_rotate %136 by %c1_i32_63 dim 0 : vector<16x128xf32>, i32 -> vector<16x128xf32>
    %c1_i32_64 = arith.constant 1 : i32
    %144 = tpu.dynamic_rotate %143 by %c1_i32_64 dim 1 : vector<16x128xf32>, i32 -> vector<16x128xf32>
    %145 = arith.addf %143, %144 : vector<16x128xf32>
    %c126_i32_65 = arith.constant 126 : i32
    %146 = tpu.dynamic_rotate %145 by %c126_i32_65 dim 1 : vector<16x128xf32>, i32 -> vector<16x128xf32>
    %147 = arith.subf %145, %146 : vector<16x128xf32>
    %148 = math.absf %147 : vector<16x128xf32>
    %cst_66 = arith.constant 2.000000e+00 : f32
    %149 = vector.broadcast %cst_66 : f32 to vector<16x128xf32>
    %150 = arith.mulf %149, %142 : vector<16x128xf32>
    %151 = arith.mulf %150, %148 : vector<16x128xf32>
    %cst_67 = arith.constant 7.360000e-03 : f32
    %152 = vector.broadcast %cst_67 : f32 to vector<16x128xf32>
    %153 = arith.addf %151, %152 : vector<16x128xf32>
    %154 = arith.mulf %142, %142 : vector<16x128xf32>
    %155 = arith.mulf %148, %148 : vector<16x128xf32>
    %156 = arith.addf %154, %155 : vector<16x128xf32>
    %cst_68 = arith.constant 7.360000e-03 : f32
    %157 = vector.broadcast %cst_68 : f32 to vector<16x128xf32>
    %158 = arith.addf %156, %157 : vector<16x128xf32>
    %159 = arith.divf %153, %158 : vector<16x128xf32>
    %160 = arith.addf %132, %159 : vector<16x128xf32>
    %c12_i32 = arith.constant 12 : i32
    %161 = tpu.dynamic_rotate %134 by %c12_i32 dim 0 : vector<16x128xf32>, i32 -> vector<16x128xf32>
    %162 = arith.addf %134, %161 : vector<16x128xf32>
    %c12_i32_69 = arith.constant 12 : i32
    %163 = tpu.dynamic_rotate %136 by %c12_i32_69 dim 0 : vector<16x128xf32>, i32 -> vector<16x128xf32>
    %164 = arith.addf %136, %163 : vector<16x128xf32>
    %c3_i32 = arith.constant 3 : i32
    %165 = tpu.dynamic_rotate %162 by %c3_i32 dim 0 : vector<16x128xf32>, i32 -> vector<16x128xf32>
    %c1_i32_70 = arith.constant 1 : i32
    %166 = tpu.dynamic_rotate %165 by %c1_i32_70 dim 1 : vector<16x128xf32>, i32 -> vector<16x128xf32>
    %167 = arith.addf %165, %166 : vector<16x128xf32>
    %c2_i32 = arith.constant 2 : i32
    %168 = tpu.dynamic_rotate %167 by %c2_i32 dim 1 : vector<16x128xf32>, i32 -> vector<16x128xf32>
    %169 = arith.addf %167, %168 : vector<16x128xf32>
    %c124_i32 = arith.constant 124 : i32
    %170 = tpu.dynamic_rotate %169 by %c124_i32 dim 1 : vector<16x128xf32>, i32 -> vector<16x128xf32>
    %171 = arith.subf %169, %170 : vector<16x128xf32>
    %172 = math.absf %171 : vector<16x128xf32>
    %c3_i32_71 = arith.constant 3 : i32
    %173 = tpu.dynamic_rotate %164 by %c3_i32_71 dim 0 : vector<16x128xf32>, i32 -> vector<16x128xf32>
    %c1_i32_72 = arith.constant 1 : i32
    %174 = tpu.dynamic_rotate %173 by %c1_i32_72 dim 1 : vector<16x128xf32>, i32 -> vector<16x128xf32>
    %175 = arith.addf %173, %174 : vector<16x128xf32>
    %c2_i32_73 = arith.constant 2 : i32
    %176 = tpu.dynamic_rotate %175 by %c2_i32_73 dim 1 : vector<16x128xf32>, i32 -> vector<16x128xf32>
    %177 = arith.addf %175, %176 : vector<16x128xf32>
    %c124_i32_74 = arith.constant 124 : i32
    %178 = tpu.dynamic_rotate %177 by %c124_i32_74 dim 1 : vector<16x128xf32>, i32 -> vector<16x128xf32>
    %179 = arith.subf %177, %178 : vector<16x128xf32>
    %180 = math.absf %179 : vector<16x128xf32>
    %181 = arith.maximumf %172, %180 : vector<16x128xf32>
    %c0_75 = arith.constant 0 : index
    %c0_76 = arith.constant 0 : index
    %c0_77 = arith.constant 0 : index
    %182 = vector.load %arg3[%c0_75, %c0_76, %c0_77] : memref<1x16x128xf32, #tpu.memory_space<vmem>>, vector<1x16x128xf32>
    %183 = vector.shape_cast %182 : vector<1x16x128xf32> to vector<16x128xf32>
    %184 = arith.mulf %181, %183 : vector<16x128xf32>
    %cst_78 = arith.constant -2.100000e+00 : f32
    %185 = vector.broadcast %cst_78 : f32 to vector<16x128xf32>
    %186 = arith.mulf %185, %160 : vector<16x128xf32>
    %187 = math.exp %186 : vector<16x128xf32>
    %cst_79 = arith.constant 1.000000e+00 : f32
    %188 = vector.broadcast %cst_79 : f32 to vector<16x128xf32>
    %189 = arith.addf %188, %187 : vector<16x128xf32>
    %cst_80 = arith.constant 1.000000e+00 : f32
    %190 = vector.broadcast %cst_80 : f32 to vector<16x128xf32>
    %191 = arith.divf %190, %189 : vector<16x128xf32>
    %192 = arith.addf %191, %95 : vector<16x128xf32>
    %193 = arith.mulf %192, %184 : vector<16x128xf32>
    %c127_i32_81 = arith.constant 127 : i32
    %194 = tpu.dynamic_rotate %103 by %c127_i32_81 dim 1 : vector<16x128xf32>, i32 -> vector<16x128xf32>
    %195 = arith.addf %103, %194 : vector<16x128xf32>
    %c127_i32_82 = arith.constant 127 : i32
    %196 = tpu.dynamic_rotate %111 by %c127_i32_82 dim 1 : vector<16x128xf32>, i32 -> vector<16x128xf32>
    %197 = arith.addf %111, %196 : vector<16x128xf32>
    %c15_i32_83 = arith.constant 15 : i32
    %198 = tpu.dynamic_rotate %195 by %c15_i32_83 dim 0 : vector<16x128xf32>, i32 -> vector<16x128xf32>
    %199 = arith.subf %195, %198 : vector<16x128xf32>
    %200 = math.absf %199 : vector<16x128xf32>
    %c15_i32_84 = arith.constant 15 : i32
    %201 = tpu.dynamic_rotate %197 by %c15_i32_84 dim 0 : vector<16x128xf32>, i32 -> vector<16x128xf32>
    %202 = arith.subf %197, %201 : vector<16x128xf32>
    %203 = math.absf %202 : vector<16x128xf32>
    %cst_85 = arith.constant 2.000000e+00 : f32
    %204 = vector.broadcast %cst_85 : f32 to vector<16x128xf32>
    %205 = arith.mulf %204, %200 : vector<16x128xf32>
    %206 = arith.mulf %205, %203 : vector<16x128xf32>
    %cst_86 = arith.constant 1.840000e-03 : f32
    %207 = vector.broadcast %cst_86 : f32 to vector<16x128xf32>
    %208 = arith.addf %206, %207 : vector<16x128xf32>
    %209 = arith.mulf %200, %200 : vector<16x128xf32>
    %210 = arith.mulf %203, %203 : vector<16x128xf32>
    %211 = arith.addf %209, %210 : vector<16x128xf32>
    %cst_87 = arith.constant 1.840000e-03 : f32
    %212 = vector.broadcast %cst_87 : f32 to vector<16x128xf32>
    %213 = arith.addf %211, %212 : vector<16x128xf32>
    %214 = arith.divf %208, %213 : vector<16x128xf32>
    %c126_i32_88 = arith.constant 126 : i32
    %215 = tpu.dynamic_rotate %195 by %c126_i32_88 dim 1 : vector<16x128xf32>, i32 -> vector<16x128xf32>
    %216 = arith.addf %195, %215 : vector<16x128xf32>
    %c126_i32_89 = arith.constant 126 : i32
    %217 = tpu.dynamic_rotate %197 by %c126_i32_89 dim 1 : vector<16x128xf32>, i32 -> vector<16x128xf32>
    %218 = arith.addf %197, %217 : vector<16x128xf32>
    %c1_i32_90 = arith.constant 1 : i32
    %219 = tpu.dynamic_rotate %216 by %c1_i32_90 dim 1 : vector<16x128xf32>, i32 -> vector<16x128xf32>
    %c1_i32_91 = arith.constant 1 : i32
    %220 = tpu.dynamic_rotate %219 by %c1_i32_91 dim 0 : vector<16x128xf32>, i32 -> vector<16x128xf32>
    %221 = arith.addf %219, %220 : vector<16x128xf32>
    %c14_i32_92 = arith.constant 14 : i32
    %222 = tpu.dynamic_rotate %221 by %c14_i32_92 dim 0 : vector<16x128xf32>, i32 -> vector<16x128xf32>
    %223 = arith.subf %221, %222 : vector<16x128xf32>
    %224 = math.absf %223 : vector<16x128xf32>
    %c1_i32_93 = arith.constant 1 : i32
    %225 = tpu.dynamic_rotate %218 by %c1_i32_93 dim 1 : vector<16x128xf32>, i32 -> vector<16x128xf32>
    %c1_i32_94 = arith.constant 1 : i32
    %226 = tpu.dynamic_rotate %225 by %c1_i32_94 dim 0 : vector<16x128xf32>, i32 -> vector<16x128xf32>
    %227 = arith.addf %225, %226 : vector<16x128xf32>
    %c14_i32_95 = arith.constant 14 : i32
    %228 = tpu.dynamic_rotate %227 by %c14_i32_95 dim 0 : vector<16x128xf32>, i32 -> vector<16x128xf32>
    %229 = arith.subf %227, %228 : vector<16x128xf32>
    %230 = math.absf %229 : vector<16x128xf32>
    %cst_96 = arith.constant 2.000000e+00 : f32
    %231 = vector.broadcast %cst_96 : f32 to vector<16x128xf32>
    %232 = arith.mulf %231, %224 : vector<16x128xf32>
    %233 = arith.mulf %232, %230 : vector<16x128xf32>
    %cst_97 = arith.constant 7.360000e-03 : f32
    %234 = vector.broadcast %cst_97 : f32 to vector<16x128xf32>
    %235 = arith.addf %233, %234 : vector<16x128xf32>
    %236 = arith.mulf %224, %224 : vector<16x128xf32>
    %237 = arith.mulf %230, %230 : vector<16x128xf32>
    %238 = arith.addf %236, %237 : vector<16x128xf32>
    %cst_98 = arith.constant 7.360000e-03 : f32
    %239 = vector.broadcast %cst_98 : f32 to vector<16x128xf32>
    %240 = arith.addf %238, %239 : vector<16x128xf32>
    %241 = arith.divf %235, %240 : vector<16x128xf32>
    %242 = arith.addf %214, %241 : vector<16x128xf32>
    %c124_i32_99 = arith.constant 124 : i32
    %243 = tpu.dynamic_rotate %216 by %c124_i32_99 dim 1 : vector<16x128xf32>, i32 -> vector<16x128xf32>
    %244 = arith.addf %216, %243 : vector<16x128xf32>
    %c124_i32_100 = arith.constant 124 : i32
    %245 = tpu.dynamic_rotate %218 by %c124_i32_100 dim 1 : vector<16x128xf32>, i32 -> vector<16x128xf32>
    %246 = arith.addf %218, %245 : vector<16x128xf32>
    %c3_i32_101 = arith.constant 3 : i32
    %247 = tpu.dynamic_rotate %244 by %c3_i32_101 dim 1 : vector<16x128xf32>, i32 -> vector<16x128xf32>
    %c1_i32_102 = arith.constant 1 : i32
    %248 = tpu.dynamic_rotate %247 by %c1_i32_102 dim 0 : vector<16x128xf32>, i32 -> vector<16x128xf32>
    %249 = arith.addf %247, %248 : vector<16x128xf32>
    %c2_i32_103 = arith.constant 2 : i32
    %250 = tpu.dynamic_rotate %249 by %c2_i32_103 dim 0 : vector<16x128xf32>, i32 -> vector<16x128xf32>
    %251 = arith.addf %249, %250 : vector<16x128xf32>
    %c12_i32_104 = arith.constant 12 : i32
    %252 = tpu.dynamic_rotate %251 by %c12_i32_104 dim 0 : vector<16x128xf32>, i32 -> vector<16x128xf32>
    %253 = arith.subf %251, %252 : vector<16x128xf32>
    %254 = math.absf %253 : vector<16x128xf32>
    %c3_i32_105 = arith.constant 3 : i32
    %255 = tpu.dynamic_rotate %246 by %c3_i32_105 dim 1 : vector<16x128xf32>, i32 -> vector<16x128xf32>
    %c1_i32_106 = arith.constant 1 : i32
    %256 = tpu.dynamic_rotate %255 by %c1_i32_106 dim 0 : vector<16x128xf32>, i32 -> vector<16x128xf32>
    %257 = arith.addf %255, %256 : vector<16x128xf32>
    %c2_i32_107 = arith.constant 2 : i32
    %258 = tpu.dynamic_rotate %257 by %c2_i32_107 dim 0 : vector<16x128xf32>, i32 -> vector<16x128xf32>
    %259 = arith.addf %257, %258 : vector<16x128xf32>
    %c12_i32_108 = arith.constant 12 : i32
    %260 = tpu.dynamic_rotate %259 by %c12_i32_108 dim 0 : vector<16x128xf32>, i32 -> vector<16x128xf32>
    %261 = arith.subf %259, %260 : vector<16x128xf32>
    %262 = math.absf %261 : vector<16x128xf32>
    %263 = arith.maximumf %254, %262 : vector<16x128xf32>
    %c0_109 = arith.constant 0 : index
    %c0_110 = arith.constant 0 : index
    %c0_111 = arith.constant 0 : index
    %264 = vector.load %arg3[%c0_109, %c0_110, %c0_111] : memref<1x16x128xf32, #tpu.memory_space<vmem>>, vector<1x16x128xf32>
    %265 = vector.shape_cast %264 : vector<1x16x128xf32> to vector<16x128xf32>
    %266 = arith.mulf %263, %265 : vector<16x128xf32>
    %cst_112 = arith.constant -2.100000e+00 : f32
    %267 = vector.broadcast %cst_112 : f32 to vector<16x128xf32>
    %268 = arith.mulf %267, %242 : vector<16x128xf32>
    %269 = math.exp %268 : vector<16x128xf32>
    %cst_113 = arith.constant 1.000000e+00 : f32
    %270 = vector.broadcast %cst_113 : f32 to vector<16x128xf32>
    %271 = arith.addf %270, %269 : vector<16x128xf32>
    %cst_114 = arith.constant 1.000000e+00 : f32
    %272 = vector.broadcast %cst_114 : f32 to vector<16x128xf32>
    %273 = arith.divf %272, %271 : vector<16x128xf32>
    %274 = arith.addf %273, %95 : vector<16x128xf32>
    %275 = arith.mulf %274, %266 : vector<16x128xf32>
    %276 = arith.addf %193, %275 : vector<16x128xf32>
    %277 = arith.addf %184, %266 : vector<16x128xf32>
    %cst_115 = arith.constant dense<0.000000e+00> : vector<128xf32>
    %278 = vector.multi_reduction <add>, %276, %cst_115 [0] : vector<16x128xf32> to vector<128xf32>
    %279 = vector.shape_cast %278 : vector<128xf32> to vector<1x128xf32>
    %cst_116 = arith.constant dense<0.000000e+00> : vector<128xf32>
    %280 = vector.multi_reduction <add>, %277, %cst_116 [0] : vector<16x128xf32> to vector<128xf32>
    %281 = vector.shape_cast %280 : vector<128xf32> to vector<1x128xf32>
    %282 = vector.extract_strided_slice %279 {offsets = [0, 0], sizes = [1, 15], strides = [1, 1]} : vector<1x128xf32> to vector<1x15xf32>
    %283 = vector.shape_cast %282 : vector<1x15xf32> to vector<1x1x15xf32>
    %cst_117 = arith.constant dense<0.000000e+00> : vector<1xf32>
    %284 = vector.multi_reduction <add>, %283, %cst_117 [1, 2] : vector<1x1x15xf32> to vector<1xf32>
    %285 = vector.shape_cast %284 : vector<1xf32> to vector<1x1x1xf32>
    %286 = vector.extract %285[0, 0, 0] : f32 from vector<1x1x1xf32>
    %287 = vector.broadcast %286 : f32 to vector<1x1xf32>
    %288 = vector.extract_strided_slice %281 {offsets = [0, 0], sizes = [1, 15], strides = [1, 1]} : vector<1x128xf32> to vector<1x15xf32>
    %289 = vector.shape_cast %288 : vector<1x15xf32> to vector<1x1x15xf32>
    %cst_118 = arith.constant dense<0.000000e+00> : vector<1xf32>
    %290 = vector.multi_reduction <add>, %289, %cst_118 [1, 2] : vector<1x1x15xf32> to vector<1xf32>
    %291 = vector.shape_cast %290 : vector<1xf32> to vector<1x1x1xf32>
    %292 = vector.extract %291[0, 0, 0] : f32 from vector<1x1x1xf32>
    %293 = vector.broadcast %292 : f32 to vector<1x1xf32>
    %cst_119 = arith.constant 1.500000e+00 : f32
    %294 = vector.broadcast %cst_119 : f32 to vector<1x1xf32>
    %295 = arith.mulf %294, %293 : vector<1x1xf32>
    %cst_120 = arith.constant 1.000000e-30 : f32
    %296 = vector.broadcast %cst_120 : f32 to vector<1x1xf32>
    %297 = arith.addf %295, %296 : vector<1x1xf32>
    %298 = arith.divf %287, %297 : vector<1x1xf32>
    %cst_121 = arith.constant 9.99999997E-7 : f32
    %cst_122 = arith.constant 0.999998986 : f32
    %299 = vector.broadcast %cst_121 : f32 to vector<1x1xf32>
    %300 = arith.maximumf %299, %298 : vector<1x1xf32>
    %301 = vector.broadcast %cst_122 : f32 to vector<1x1xf32>
    %302 = arith.minimumf %301, %300 : vector<1x1xf32>
    %cst_123 = arith.constant 1.000000e+00 : f32
    %303 = vector.broadcast %cst_123 : f32 to vector<1x1xf32>
    %304 = arith.subf %303, %302 : vector<1x1xf32>
    %305 = arith.divf %302, %304 : vector<1x1xf32>
    %306 = math.log %305 : vector<1x1xf32>
    %cst_124 = arith.constant 0.238095239 : f32
    %307 = vector.broadcast %cst_124 : f32 to vector<1x1xf32>
    %308 = arith.mulf %306, %307 : vector<1x1xf32>
    %309 = arith.mulf %308, %308 : vector<1x1xf32>
    %c0_125 = arith.constant 0 : index
    %c0_126 = arith.constant 0 : index
    %c0_127 = arith.constant 0 : index
    %310 = vector.load %arg4[%c0_125, %c0_126, %c0_127] : memref<1x1x1xf32, #tpu.memory_space<vmem>>, vector<1x1x1xf32>
    %311 = vector.shape_cast %310 : vector<1x1x1xf32> to vector<1x1xf32>
    %312 = vector.shape_cast %309 : vector<1x1xf32> to vector<1x1x1xf32>
    tpu.vector_store %arg4[%c0_125, %c0_126, %c0_127], %312 {strides = array<i32>} : memref<1x1x1xf32, #tpu.memory_space<vmem>>, vector<1x1x1xf32>,
    return
  }
  func.func @transform_0(%arg0: i32) -> (i32, i32, i32, i32) {
    %c0_i32 = arith.constant 0 : i32
    %c0_i32_0 = arith.constant 0 : i32
    %c0_i32_1 = arith.constant 0 : i32
    %c0_i32_2 = arith.constant 0 : i32
    return %arg0, %c0_i32, %c0_i32_0, %c0_i32_1 : i32, i32, i32, i32
  }
  func.func @transform_1(%arg0: i32) -> (i32, i32, i32, i32) {
    %c0_i32 = arith.constant 0 : i32
    %c0_i32_0 = arith.constant 0 : i32
    %c0_i32_1 = arith.constant 0 : i32
    %c0_i32_2 = arith.constant 0 : i32
    return %arg0, %c0_i32, %c0_i32_0, %c0_i32_1 : i32, i32, i32, i32
  }
  func.func @transform_2(%arg0: i32) -> (i32, i32, i32) {
    %c0_i32 = arith.constant 0 : i32
    %c0_i32_0 = arith.constant 0 : i32
    %c0_i32_1 = arith.constant 0 : i32
    %c0_i32_2 = arith.constant 0 : i32
    return %c0_i32, %c0_i32_0, %c0_i32_1 : i32, i32, i32
  }
  func.func @transform_3(%arg0: i32) -> (i32, i32, i32) {
    %c0_i32 = arith.constant 0 : i32
    %c0_i32_0 = arith.constant 0 : i32
    %c0_i32_1 = arith.constant 0 : i32
    return %arg0, %c0_i32, %c0_i32_0 : i32, i32, i32
  }
}

</mosaic_0001>

<llo_original>
// kernel: tpu_custom_call.1
$region0: #{tpu_custom_call.1}
  #allocation0 [shape = 'u32[]', space=smem, size = 0x4, offset = 0x4, fixed_abs, tag = 'smem constant byte address 0x4 - core index']
  #allocation1 [shape = 'u32[144,128]{1,0:T(1,128)}', space=vmem, size = 0x12000, scoped, tag = 'internal scratch']
  %s0 = inlined_call_operand.hbm [shape: f32[2,3,16,128], index: 0, kind: input, shape index: {}]
  %s1 = inlined_call_operand.hbm [shape: f32[2,3,16,128], index: 1, kind: input, shape index: {}]
  %s2 = inlined_call_operand.hbm [shape: f32[1,16,128], index: 2, kind: input, shape index: {}]
  %s3 = inlined_call_operand.vmem [shape: f32[2,1,1], index: 3, kind: output, shape index: {}]
  %s4 = sld [smem:[#allocation0]]
  $region57: #{tpu_custom_call.1} parent=0
    _
  %s6 = ssub.s32 1, %s4
  %s7 = scalar_select 0, %s6, %s4
  $region1: #{tpu_custom_call.1} parent=0
    #allocation2 [shape = 'u8[49152]{0}', space=vmem, size = 0xc000, scoped, tag = 'input window, operand 0']
    #allocation3 [shape = 's32[2]{0}', space=sflag, size = 0x8, scoped, tag = 'scoped memory for tpu_custom_call.1']
    #allocation4 [shape = 'u8[49152]{0}', space=vmem, size = 0xc000, scoped, tag = 'input window, operand 1']
    #allocation5 [shape = 's32[2]{0}', space=sflag, size = 0x8, scoped, tag = 'scoped memory for tpu_custom_call.1']
    #allocation6 [shape = 'u8[8192]{0}', space=vmem, size = 0x2000, scoped, tag = 'input window, operand 2, single buffered']
    %8 = vsyncpa [#allocation3], 0
    %s9 = scalar_lea.sflag [#allocation3], 1
    %10 = vsyncpa %s9, 0
    %11 = vsyncpa [#allocation5], 0
    %s12 = scalar_lea.sflag [#allocation5], 1
    %13 = vsyncpa %s12, 0
    loop: start=0, step=1, limit=4
    $region2: #{tpu_custom_call.1} parent=1 // loop_pre_header
      _
    $region3: #{tpu_custom_call.1} parent=1 // loop_header
      %s15 = sphi 0, %s19
      %p16 = scmp.ge.s32.totalorder %s15, 4
      %s25 = sphi 0, %s27
      %s28 = sphi 0, %s25
      %s29 = sphi 0, %s28
      %s45 = sphi 0, %s29
      %s51 = sphi 0, %s53
      %s54 = sphi 0, %s51
      %s55 = sphi 0, %s54
      %s71 = sphi 0, %s55
      %s75 = sphi 0, %s75
      %s77 = sphi 0, %s75
      %s78 = sphi 0, %s77
      %s92 = sphi 0, %s78
      %s98 = sphi 0, %s100
      %s101 = sphi 0, %s98
      %s102 = sphi 0, %s101
      %s118 = sphi 0, %s102
    $region4: #{tpu_custom_call.1} parent=1 // loop_header_branch
      %18 = sbr.rel (%p16) target = $region8
    $region5: #{tpu_custom_call.1} parent=1 // loop_body
      %s20 = ssub.s32 %s15, 1
      %s21 = ssub.s32 %s15, 2
      %s22 = sadd.s32 %s15, 1
      %s23 = ssub.s32 %s15, %s22
      %p24 = scmp.eq.s32.totalorder %s23, 0
      %s26 = sadd.s32 %s25, 1
      %s27 = scalar_select %p24, %s25, %s26
      %p30 = pneg %p24
      %p31 = scmp.eq.s32.totalorder %s15, 1
      %p32 = por %p30, %p31
      %p33 = scmp.ne.s32.totalorder %s25, %s28
      %p34 = scmp.eq.s32.totalorder %s15, 0
      %p35 = por %p33, %p34
      %p36 = scmp.ne.s32.totalorder %s25, %s28
      %p37 = scmp.eq.s32.totalorder %s20, 1
      %p38 = por %p36, %p37
      %p39 = scmp.ne.s32.totalorder %s28, %s29
      %p40 = scmp.eq.s32.totalorder %s20, 0
      %p41 = por %p39, %p40
      %p42 = scmp.ne.s32.totalorder %s28, %s29
      %p43 = scmp.eq.s32.totalorder %s21, 1
      %p44 = por %p42, %p43
      %p46 = scmp.ne.s32.totalorder %s29, %s45
      %p47 = scmp.eq.s32.totalorder %s21, 0
      %p48 = por %p46, %p47
      %s49 = ssub.s32 %s15, %s22
      %p50 = scmp.eq.s32.totalorder %s49, 0
      %s52 = sadd.s32 %s51, 1
      %s53 = scalar_select %p50, %s51, %s52
      %p56 = pneg %p50
      %p57 = scmp.eq.s32.totalorder %s15, 1
      %p58 = por %p56, %p57
      %p59 = scmp.ne.s32.totalorder %s51, %s54
      %p60 = scmp.eq.s32.totalorder %s15, 0
      %p61 = por %p59, %p60
      %p62 = scmp.ne.s32.totalorder %s51, %s54
      %p63 = scmp.eq.s32.totalorder %s20, 1
      %p64 = por %p62, %p63
      %p65 = scmp.ne.s32.totalorder %s54, %s55
      %p66 = scmp.eq.s32.totalorder %s20, 0
      %p67 = por %p65, %p66
      %p68 = scmp.ne.s32.totalorder %s54, %s55
      %p69 = scmp.eq.s32.totalorder %s21, 1
      %p70 = por %p68, %p69
      %p72 = scmp.ne.s32.totalorder %s55, %s71
      %p73 = scmp.eq.s32.totalorder %s21, 0
      %p74 = por %p72, %p73
      %s76 = sadd.s32 %s75, 1
      %p79 = scmp.eq.s32.totalorder %s15, 1
      %p80 = scmp.ne.s32.totalorder %s75, %s77
      %p81 = scmp.eq.s32.totalorder %s15, 0
      %p82 = por %p80, %p81
      %p83 = scmp.ne.s32.totalorder %s75, %s77
      %p84 = scmp.eq.s32.totalorder %s20, 1
      %p85 = por %p83, %p84
      %p86 = scmp.ne.s32.totalorder %s77, %s78
      %p87 = scmp.eq.s32.totalorder %s20, 0
      %p88 = por %p86, %p87
      %p89 = scmp.ne.s32.totalorder %s77, %s78
      %p90 = scmp.eq.s32.totalorder %s21, 1
      %p91 = por %p89, %p90
      %p93 = scmp.ne.s32.totalorder %s78, %s92
      %p94 = scmp.eq.s32.totalorder %s21, 0
      %p95 = por %p93, %p94
      %s96 = ssub.s32 %s15, %s22
      %p97 = scmp.eq.s32.totalorder %s96, 0
      %s99 = sadd.s32 %s98, 1
      %s100 = scalar_select %p97, %s98, %s99
      %p103 = pneg %p97
      %p104 = scmp.eq.s32.totalorder %s15, 1
      %p105 = por %p103, %p104
      %p106 = scmp.ne.s32.totalorder %s98, %s101
      %p107 = scmp.eq.s32.totalorder %s15, 0
      %p108 = por %p106, %p107
      %p109 = scmp.ne.s32.totalorder %s98, %s101
      %p110 = scmp.eq.s32.totalorder %s20, 1
      %p111 = por %p109, %p110
      %p112 = scmp.ne.s32.totalorder %s101, %s102
      %p113 = scmp.eq.s32.totalorder %s20, 0
      %p114 = por %p112, %p113
      %p115 = scmp.ne.s32.totalorder %s101, %s102
      %p116 = scmp.eq.s32.totalorder %s21, 1
      %p117 = por %p115, %p116
      %p119 = scmp.ne.s32.totalorder %s102, %s118
      %p120 = scmp.eq.s32.totalorder %s21, 0
      %p121 = por %p119, %p120
      %p122 = scmp.le.s32.totalorder 1, %s15
      %p123 = scmp.lt.s32.totalorder %s15, 3
      %p124 = pnand %p122, %p123
      %p125 = pneg %p124
      // Predicated region
      $region9: #{tpu_custom_call.1} parent=5 // pred_check
        _
      $region10: #{tpu_custom_call.1} parent=5 // pred_check_branch
        %127 = sbr.rel (%p124) target = $region12
      $region11: #{tpu_custom_call.1} parent=5 // pred_region
        %s128 = ssub.s32 %s15, 1
        // Predicated region
        $region13: #{tpu_custom_call.1} parent=11 // pred_check
          %p129 = pneg %p88
        $region14: #{tpu_custom_call.1} parent=11 // pred_check_branch
          %131 = sbr.rel (%p129) target = $region16
        $region15: #{tpu_custom_call.1} parent=11 // pred_region
          %s133 = ssub.s32 256, 256
          %134 = vsyncadd [#allocation5], %s133
          %s135 = sshll.u32 [#allocation6], 4
          %s136 = int_to_ptr.vmem [resolvable:$true] %s135
          %141 = dma.hbm_to_vmem [thread:$0]  %s2, 256, %s136, [#allocation5], 128, 128, 8
        $region16: #{tpu_custom_call.1} parent=11 // pred_fallthru
          _
      $region12: #{tpu_custom_call.1} parent=5 // pred_fallthru
        _
      %p142 = scmp.lt.s32.totalorder %s15, 2
      // Predicated region
      $region17: #{tpu_custom_call.1} parent=5 // pred_check
        %p143 = pneg %p142
      $region18: #{tpu_custom_call.1} parent=5 // pred_check_branch
        %145 = sbr.rel (%p143) target = $region20
      $region19: #{tpu_custom_call.1} parent=5 // pred_region
        // Predicated region
        $region21: #{tpu_custom_call.1} parent=19 // pred_check
          %p146 = pneg %p35
        $region22: #{tpu_custom_call.1} parent=19 // pred_check_branch
          %148 = sbr.rel (%p146) target = $region24
        $region23: #{tpu_custom_call.1} parent=19 // pred_region
          %s149 = sand.u32 %s25, 1
          %s150 = scalar_lea.sflag [#allocation3], %s149
          %s151 = sand.u32 %s25, 1
          %s152 = smul.addr %s151, 48
          %s153 = scalar_lea.vmem [#allocation2], %s152
          %s155 = ssub.s32 768, 768
          %156 = vsyncadd %s150, %s155
          %s157 = smul.addr %s15, 6
          %s158 = smul.addr %s157, 128
          %s159 = scalar_lea.hbm %s0, %s158
          %s160 = sshll.u32 %s153, 4
          %s161 = int_to_ptr.vmem [resolvable:$true] %s160
          %166 = dma.hbm_to_vmem [thread:$0]  %s159, 768, %s161, %s150, 128, 128, 8
        $region24: #{tpu_custom_call.1} parent=19 // pred_fallthru
          _
        // Predicated region
        $region25: #{tpu_custom_call.1} parent=19 // pred_check
          %p167 = pneg %p61
        $region26: #{tpu_custom_call.1} parent=19 // pred_check_branch
          %169 = sbr.rel (%p167) target = $region28
        $region27: #{tpu_custom_call.1} parent=19 // pred_region
          %s170 = sand.u32 %s15, 1
          %s171 = scalar_lea.sflag [#allocation5], %s170
          %s172 = sand.u32 %s51, 1
          %s173 = smul.addr %s172, 48
          %s174 = scalar_lea.vmem [#allocation4], %s173
          %s176 = ssub.s32 768, 768
          %177 = vsyncadd %s171, %s176
          %s178 = smul.addr %s15, 6
          %s179 = smul.addr %s178, 128
          %s180 = scalar_lea.hbm %s1, %s179
          %s181 = sshll.u32 %s174, 4
          %s182 = int_to_ptr.vmem [resolvable:$true] %s181
          %187 = dma.hbm_to_vmem [thread:$0]  %s180, 768, %s182, %s171, 128, 128, 8
        $region28: #{tpu_custom_call.1} parent=19 // pred_fallthru
          _
      $region20: #{tpu_custom_call.1} parent=5 // pred_fallthru
        _
      %p188 = scmp.le.s32.totalorder 1, %s15
      %p189 = scmp.lt.s32.totalorder %s15, 3
      %p190 = pnand %p188, %p189
      %p191 = pneg %p190
      // Predicated region
      $region29: #{tpu_custom_call.1} parent=5 // pred_check
        _
      $region30: #{tpu_custom_call.1} parent=5 // pred_check_branch
        %193 = sbr.rel (%p190) target = $region32
      $region31: #{tpu_custom_call.1} parent=5 // pred_region
        %s194 = ssub.s32 %s15, 1
        %s195 = sand.u32 %s28, 1
        %s196 = scalar_lea.sflag [#allocation3], %s195
        %s197 = sand.u32 %s28, 1
        %s198 = smul.addr %s197, 48
        %s199 = scalar_lea.vmem [#allocation2], %s198
        // Predicated region
        $region33: #{tpu_custom_call.1} parent=31 // pred_check
          %p200 = pneg %p41
        $region34: #{tpu_custom_call.1} parent=31 // pred_check_branch
          %202 = sbr.rel (%p200) target = $region36
        $region35: #{tpu_custom_call.1} parent=31 // pred_region
          %203 = dma.done %s196, 768
        $region36: #{tpu_custom_call.1} parent=31 // pred_fallthru
          _
        %s204 = sand.u32 %s20, 1
        %s205 = scalar_lea.sflag [#allocation5], %s204
        %s206 = sand.u32 %s54, 1
        %s207 = smul.addr %s206, 48
        %s208 = scalar_lea.vmem [#allocation4], %s207
        // Predicated region
        $region37: #{tpu_custom_call.1} parent=31 // pred_check
          %p209 = pneg %p67
        $region38: #{tpu_custom_call.1} parent=31 // pred_check_branch
          %211 = sbr.rel (%p209) target = $region40
        $region39: #{tpu_custom_call.1} parent=31 // pred_region
          %212 = dma.done %s205, 768
        $region40: #{tpu_custom_call.1} parent=31 // pred_fallthru
          _
        // Predicated region
        $region41: #{tpu_custom_call.1} parent=31 // pred_check
          %p213 = pneg %p88
        $region42: #{tpu_custom_call.1} parent=31 // pred_check_branch
          %215 = sbr.rel (%p213) target = $region44
        $region43: #{tpu_custom_call.1} parent=31 // pred_region
          %216 = dma.done [#allocation5], 256
        $region44: #{tpu_custom_call.1} parent=31 // pred_fallthru
          _
        %s217 = sand.u32 %s28, 1
        %s218 = scalar_lea.sflag [#allocation3], %s217
        %s219 = sand.u32 %s28, 1
        %s220 = smul.addr %s219, 48
        %s221 = scalar_lea.vmem [#allocation2], %s220
        %p222 = pneg %p41
        %p223 = pneg %p38
        %s224 = sand.u32 %s20, 1
        %s225 = scalar_lea.sflag [#allocation5], %s224
        %s226 = sand.u32 %s54, 1
        %s227 = smul.addr %s226, 48
        %s228 = scalar_lea.vmem [#allocation4], %s227
        %p229 = pneg %p67
        %p230 = pneg %p64
        %p231 = pneg %p88
        %p232 = pneg %p85
        %p233 = pneg %p114
        %p234 = pneg %p111
        %p235 = scmp.lt.s32.totalorder %s20, 1
        %s236 = scalar_select %p235, %s20, 1
        %s237 = scalar_lea.vmem %s3, %s236
        %p238 = scmp.lt.s32.totalorder %s20, 1
        %s239 = scalar_select %p238, %s20, 1
        %s240 = scalar_lea.vmem %s3, %s239
        %v241 = vld [vmem:[%s199] sm:$0xff]
        %v242 = vld [vmem:[%s199 + $0x8] sm:$0xff]
        %s243 = scalar_lea.vmem %s199, 16 [#allocation2]
        %v244 = vld [vmem:[%s243] sm:$0xff]
        %v245 = vld [vmem:[%s243 + $0x8] sm:$0xff]
        %s246 = scalar_lea.vmem %s199, 32 [#allocation2]
        %v247 = vld [vmem:[%s246] sm:$0xff]
        %v248 = vld [vmem:[%s246 + $0x8] sm:$0xff]
        %v249 = vld [vmem:[%s208] sm:$0xff]
        %v250 = vld [vmem:[%s208 + $0x8] sm:$0xff]
        %s251 = scalar_lea.vmem %s208, 16 [#allocation4]
        %v252 = vld [vmem:[%s251] sm:$0xff]
        %v253 = vld [vmem:[%s251 + $0x8] sm:$0xff]
        %s254 = scalar_lea.vmem %s208, 32 [#allocation4]
        %v255 = vld [vmem:[%s254] sm:$0xff]
        %v256 = vld [vmem:[%s254 + $0x8] sm:$0xff]
        %v257 = vmul.f32 %v241, 0.596
        %v258 = vmul.f32 %v242, 0.596
        %v259 = vmul.f32 %v244, -0.274
        %v260 = vmul.f32 %v245, -0.274
        %v261 = vadd.f32 %v257, %v259
        %v262 = vadd.f32 %v258, %v260
        %v263 = vmul.f32 %v247, -0.322
        %v264 = vmul.f32 %v248, -0.322
        %v265 = vadd.f32 %v261, %v263
        %v266 = vadd.f32 %v262, %v264
        %267 = vrot.lane.b32.xlu0 %v265, 127
        %v268 = vpop.permute.xlu0 %267
        %269 = vrot.lane.b32.xlu0 %v266, 127
        %v270 = vpop.permute.xlu0 %269
        %v271 = vadd.f32 %v265, %v268
        %v272 = vadd.f32 %v266, %v270
        %v273 = vrot.slane %v271, 1
        %v274 = vrot.slane %v272, 1
        %v275 = vlaneseq
        %v276 = vshrl.u32 %v275, 7
        %vm277 = vcmp.lt.s32.totalorder %v276, 7
        %v278 = vsel %vm277, %v273, %v274
        %v279 = vsel %vm277, %v274, %v273
        %v280 = vadd.f32 %v271, %v278
        %v281 = vadd.f32 %v272, %v279
        %v282 = vand.u32 2147483647, %v280
        %v283 = vand.u32 2147483647, %v281
        %v284 = vmul.f32 %v249, 0.596
        %v285 = vmul.f32 %v250, 0.596
        %v286 = vmul.f32 %v252, -0.274
        %v287 = vmul.f32 %v253, -0.274
        %v288 = vadd.f32 %v284, %v286
        %v289 = vadd.f32 %v285, %v287
        %v290 = vmul.f32 %v255, -0.322
        %v291 = vmul.f32 %v256, -0.322
        %v292 = vadd.f32 %v288, %v290
        %v293 = vadd.f32 %v289, %v291
        %294 = vrot.lane.b32.xlu0 %v292, 127
        %v295 = vpop.permute.xlu0 %294
        %296 = vrot.lane.b32.xlu0 %v293, 127
        %v297 = vpop.permute.xlu0 %296
        %v298 = vadd.f32 %v292, %v295
        %v299 = vadd.f32 %v293, %v297
        %v300 = vrot.slane %v298, 1
        %v301 = vrot.slane %v299, 1
        %v302 = vsel %vm277, %v300, %v301
        %v303 = vsel %vm277, %v301, %v300
        %v304 = vadd.f32 %v298, %v302
        %v305 = vadd.f32 %v299, %v303
        %v306 = vand.u32 2147483647, %v304
        %v307 = vand.u32 2147483647, %v305
        %v308 = vmul.f32 %v282, 2.0
        %v309 = vmul.f32 %v283, 2.0
        %v310 = vmul.f32 %v308, %v306
        %v311 = vmul.f32 %v309, %v307
        %v312 = vadd.f32 %v310, 0.00736
        %v313 = vadd.f32 %v311, 0.00736
        %v314 = vmul.f32 %v282, %v282
        %v315 = vmul.f32 %v283, %v283
        %v316 = vmul.f32 %v306, %v306
        %v317 = vmul.f32 %v307, %v307
        %v318 = vadd.f32 %v314, %v316
        %v319 = vadd.f32 %v315, %v317
        %v320 = vadd.f32 %v318, 0.00736
        %v321 = vadd.f32 %v319, 0.00736
        %v322 = vrcp.pop %v320
        %v323 = vmul.f32 %v312, %v322
        %v324 = vrcp.pop %v321
        %v325 = vmul.f32 %v313, %v324
        %v326 = vmul.f32 %v241, 0.211
        %v327 = vmul.f32 %v242, 0.211
        %v328 = vmul.f32 %v244, -0.523
        %v329 = vmul.f32 %v245, -0.523
        %v330 = vadd.f32 %v326, %v328
        %v331 = vadd.f32 %v327, %v329
        %v332 = vmul.f32 %v247, 0.312
        %v333 = vmul.f32 %v248, 0.312
        %v334 = vadd.f32 %v330, %v332
        %v335 = vadd.f32 %v331, %v333
        %336 = vrot.lane.b32.xlu0 %v334, 127
        %v337 = vpop.permute.xlu0 %336
        %338 = vrot.lane.b32.xlu0 %v335, 127
        %v339 = vpop.permute.xlu0 %338
        %v340 = vadd.f32 %v334, %v337
        %v341 = vadd.f32 %v335, %v339
        %v342 = vrot.slane %v340, 1
        %v343 = vrot.slane %v341, 1
        %v344 = vsel %vm277, %v342, %v343
        %v345 = vsel %vm277, %v343, %v342
        %v346 = vadd.f32 %v340, %v344
        %v347 = vadd.f32 %v341, %v345
        %v348 = vand.u32 2147483647, %v346
        %v349 = vand.u32 2147483647, %v347
        %v350 = vmul.f32 %v249, 0.211
        %v351 = vmul.f32 %v250, 0.211
        %v352 = vmul.f32 %v252, -0.523
        %v353 = vmul.f32 %v253, -0.523
        %v354 = vadd.f32 %v350, %v352
        %v355 = vadd.f32 %v351, %v353
        %v356 = vmul.f32 %v255, 0.312
        %v357 = vmul.f32 %v256, 0.312
        %v358 = vadd.f32 %v354, %v356
        %v359 = vadd.f32 %v355, %v357
        %360 = vrot.lane.b32.xlu0 %v358, 127
        %v361 = vpop.permute.xlu0 %360
        %362 = vrot.lane.b32.xlu0 %v359, 127
        %v363 = vpop.permute.xlu0 %362
        %v364 = vadd.f32 %v358, %v361
        %v365 = vadd.f32 %v359, %v363
        %v366 = vrot.slane %v364, 1
        %v367 = vrot.slane %v365, 1
        %v368 = vsel %vm277, %v366, %v367
        %v369 = vsel %vm277, %v367, %v366
        %v370 = vadd.f32 %v364, %v368
        %v371 = vadd.f32 %v365, %v369
        %v372 = vand.u32 2147483647, %v370
        %v373 = vand.u32 2147483647, %v371
        %v374 = vmul.f32 %v348, 2.0
        %v375 = vmul.f32 %v349, 2.0
        %v376 = vmul.f32 %v374, %v372
        %v377 = vmul.f32 %v375, %v373
        %v378 = vadd.f32 %v376, 0.00736
        %v379 = vadd.f32 %v377, 0.00736
        %v380 = vmul.f32 %v348, %v348
        %v381 = vmul.f32 %v349, %v349
        %v382 = vmul.f32 %v372, %v372
        %v383 = vmul.f32 %v373, %v373
        %v384 = vadd.f32 %v380, %v382
        %v385 = vadd.f32 %v381, %v383
        %v386 = vadd.f32 %v384, 0.00736
        %v387 = vadd.f32 %v385, 0.00736
        %v388 = vrcp.pop %v386
        %v389 = vmul.f32 %v378, %v388
        %v390 = vrcp.pop %v387
        %v391 = vmul.f32 %v379, %v390
        %v392 = vadd.f32 %v323, %v389
        %v393 = vadd.f32 %v325, %v391
        %v394 = vmul.f32 %v392, -2.1
        %v395 = vmul.f32 %v393, -2.1
        %v396 = vmul.f32 %v394, 1.442695
        %v397 = vpow.pop %v396
        %v398 = vmul.f32 %v395, 1.442695
        %v399 = vpow.pop %v398
        %v400 = vadd.f32 %v397, 1.0
        %v401 = vadd.f32 %v399, 1.0
        %v402 = vrcp.pop %v400
        %v403 = vmul.f32 1.0, %v402
        %v404 = vrcp.pop %v401
        %v405 = vmul.f32 1.0, %v404
        %v406 = vmul.f32 %v403, 0.5
        %v407 = vmul.f32 %v405, 0.5
        %v408 = vmul.f32 %v241, 0.299
        %v409 = vmul.f32 %v242, 0.299
        %v410 = vmul.f32 %v244, 0.587
        %v411 = vmul.f32 %v245, 0.587
        %v412 = vadd.f32 %v408, %v410
        %v413 = vadd.f32 %v409, %v411
        %v414 = vmul.f32 %v247, 0.114
        %v415 = vmul.f32 %v248, 0.114
        %v416 = vadd.f32 %v412, %v414
        %v417 = vadd.f32 %v413, %v415
        %v418 = vmul.f32 %v249, 0.299
        %v419 = vmul.f32 %v250, 0.299
        %v420 = vmul.f32 %v252, 0.587
        %v421 = vmul.f32 %v253, 0.587
        %v422 = vadd.f32 %v418, %v420
        %v423 = vadd.f32 %v419, %v421
        %v424 = vmul.f32 %v255, 0.114
        %v425 = vmul.f32 %v256, 0.114
        %v426 = vadd.f32 %v422, %v424
        %v427 = vadd.f32 %v423, %v425
        %v428 = vrot.slane %v416, 1
        %v429 = vrot.slane %v417, 1
        %v430 = vsel %vm277, %v428, %v429
        %v431 = vsel %vm277, %v429, %v428
        %v432 = vadd.f32 %v416, %v430
        %v433 = vadd.f32 %v417, %v431
        %v434 = vrot.slane %v426, 1
        %v435 = vrot.slane %v427, 1
        %v436 = vsel %vm277, %v434, %v435
        %v437 = vsel %vm277, %v435, %v434
        %v438 = vadd.f32 %v426, %v436
        %v439 = vadd.f32 %v427, %v437
        %440 = vrot.lane.b32.xlu0 %v432, 127
        %v441 = vpop.permute.xlu0 %440
        %442 = vrot.lane.b32.xlu0 %v433, 127
        %v443 = vpop.permute.xlu0 %442
        %v444 = vsub.f32 %v432, %v441
        %v445 = vsub.f32 %v433, %v443
        %v446 = vand.u32 2147483647, %v444
        %v447 = vand.u32 2147483647, %v445
        %448 = vrot.lane.b32.xlu0 %v438, 127
        %v449 = vpop.permute.xlu0 %448
        %450 = vrot.lane.b32.xlu0 %v439, 127
        %v451 = vpop.permute.xlu0 %450
        %v452 = vsub.f32 %v438, %v449
        %v453 = vsub.f32 %v439, %v451
        %v454 = vand.u32 2147483647, %v452
        %v455 = vand.u32 2147483647, %v453
        %v456 = vmul.f32 %v446, 2.0
        %v457 = vmul.f32 %v447, 2.0
        %v458 = vmul.f32 %v456, %v454
        %v459 = vmul.f32 %v457, %v455
        %v460 = vadd.f32 %v458, 0.00184
        %v461 = vadd.f32 %v459, 0.00184
        %v462 = vmul.f32 %v446, %v446
        %v463 = vmul.f32 %v447, %v447
        %v464 = vmul.f32 %v454, %v454
        %v465 = vmul.f32 %v455, %v455
        %v466 = vadd.f32 %v462, %v464
        %v467 = vadd.f32 %v463, %v465
        %v468 = vadd.f32 %v466, 0.00184
        %v469 = vadd.f32 %v467, 0.00184
        %v470 = vrcp.pop %v468
        %v471 = vmul.f32 %v460, %v470
        %v472 = vrcp.pop %v469
        %v473 = vmul.f32 %v461, %v472
        %v474 = vrot.slane %v432, 2
        %v475 = vrot.slane %v433, 2
        %vm476 = vcmp.lt.s32.totalorder %v276, 6
        %v477 = vsel %vm476, %v474, %v475
        %v478 = vsel %vm476, %v475, %v474
        %v479 = vadd.f32 %v432, %v477
        %v480 = vadd.f32 %v433, %v478
        %v481 = vrot.slane %v438, 2
        %v482 = vrot.slane %v439, 2
        %v483 = vsel %vm476, %v481, %v482
        %v484 = vsel %vm476, %v482, %v481
        %v485 = vadd.f32 %v438, %v483
        %v486 = vadd.f32 %v439, %v484
        %v487 = vrot.slane %v479, 7
        %v488 = vrot.slane %v480, 7
        %vm489 = vcmp.lt.s32.totalorder %v276, 1
        %v490 = vsel %vm489, %v487, %v488
        %v491 = vsel %vm489, %v488, %v487
        %492 = vrot.lane.b32.xlu0 %v491, 1
        %v493 = vpop.permute.xlu0 %492
        %494 = vrot.lane.b32.xlu0 %v490, 1
        %v495 = vpop.permute.xlu0 %494
        %v496 = vadd.f32 %v491, %v493
        %v497 = vadd.f32 %v490, %v495
        %498 = vrot.lane.b32.xlu0 %v496, 126
        %v499 = vpop.permute.xlu0 %498
        %500 = vrot.lane.b32.xlu0 %v497, 126
        %v501 = vpop.permute.xlu0 %500
        %v502 = vsub.f32 %v496, %v499
        %v503 = vsub.f32 %v497, %v501
        %v504 = vand.u32 2147483647, %v502
        %v505 = vand.u32 2147483647, %v503
        %v506 = vrot.slane %v485, 7
        %v507 = vrot.slane %v486, 7
        %v508 = vsel %vm489, %v506, %v507
        %v509 = vsel %vm489, %v507, %v506
        %510 = vrot.lane.b32.xlu0 %v509, 1
        %v511 = vpop.permute.xlu0 %510
        %512 = vrot.lane.b32.xlu0 %v508, 1
        %v513 = vpop.permute.xlu0 %512
        %v514 = vadd.f32 %v509, %v511
        %v515 = vadd.f32 %v508, %v513
        %516 = vrot.lane.b32.xlu0 %v514, 126
        %v517 = vpop.permute.xlu0 %516
        %518 = vrot.lane.b32.xlu0 %v515, 126
        %v519 = vpop.permute.xlu0 %518
        %v520 = vsub.f32 %v514, %v517
        %v521 = vsub.f32 %v515, %v519
        %v522 = vand.u32 2147483647, %v520
        %v523 = vand.u32 2147483647, %v521
        %v524 = vmul.f32 %v504, 2.0
        %v525 = vmul.f32 %v505, 2.0
        %v526 = vmul.f32 %v524, %v522
        %v527 = vmul.f32 %v525, %v523
        %v528 = vadd.f32 %v526, 0.00736
        %v529 = vadd.f32 %v527, 0.00736
        %v530 = vmul.f32 %v504, %v504
        %v531 = vmul.f32 %v505, %v505
        %v532 = vmul.f32 %v522, %v522
        %v533 = vmul.f32 %v523, %v523
        %v534 = vadd.f32 %v530, %v532
        %v535 = vadd.f32 %v531, %v533
        %v536 = vadd.f32 %v534, 0.00736
        %v537 = vadd.f32 %v535, 0.00736
        %v538 = vrcp.pop %v536
        %v539 = vmul.f32 %v528, %v538
        %v540 = vrcp.pop %v537
        %v541 = vmul.f32 %v529, %v540
        %v542 = vadd.f32 %v471, %v539
        %v543 = vadd.f32 %v473, %v541
        %v544 = vrot.slane %v479, 4
        %v545 = vrot.slane %v480, 4
        %vm546 = vcmp.lt.s32.totalorder %v276, 4
        %v547 = vsel %vm546, %v544, %v545
        %v548 = vsel %vm546, %v545, %v544
        %v549 = vadd.f32 %v479, %v547
        %v550 = vadd.f32 %v480, %v548
        %v551 = vrot.slane %v485, 4
        %v552 = vrot.slane %v486, 4
        %v553 = vsel %vm546, %v551, %v552
        %v554 = vsel %vm546, %v552, %v551
        %v555 = vadd.f32 %v485, %v553
        %v556 = vadd.f32 %v486, %v554
        %v557 = vrot.slane %v549, 5
        %v558 = vrot.slane %v550, 5
        %vm559 = vcmp.lt.s32.totalorder %v276, 3
        %v560 = vsel %vm559, %v557, %v558
        %v561 = vsel %vm559, %v558, %v557
        %562 = vrot.lane.b32.xlu0 %v561, 1
        %v563 = vpop.permute.xlu0 %562
        %564 = vrot.lane.b32.xlu0 %v560, 1
        %v565 = vpop.permute.xlu0 %564
        %v566 = vadd.f32 %v561, %v563
        %v567 = vadd.f32 %v560, %v565
        %568 = vrot.lane.b32.xlu0 %v566, 2
        %v569 = vpop.permute.xlu0 %568
        %570 = vrot.lane.b32.xlu0 %v567, 2
        %v571 = vpop.permute.xlu0 %570
        %v572 = vadd.f32 %v566, %v569
        %v573 = vadd.f32 %v567, %v571
        %574 = vrot.lane.b32.xlu0 %v572, 124
        %v575 = vpop.permute.xlu0 %574
        %576 = vrot.lane.b32.xlu0 %v573, 124
        %v577 = vpop.permute.xlu0 %576
        %v578 = vsub.f32 %v572, %v575
        %v579 = vsub.f32 %v573, %v577
        %v580 = vand.u32 2147483647, %v578
        %v581 = vand.u32 2147483647, %v579
        %v582 = vrot.slane %v555, 5
        %v583 = vrot.slane %v556, 5
        %v584 = vsel %vm559, %v582, %v583
        %v585 = vsel %vm559, %v583, %v582
        %586 = vrot.lane.b32.xlu0 %v585, 1
        %v587 = vpop.permute.xlu0 %586
        %588 = vrot.lane.b32.xlu0 %v584, 1
        %v589 = vpop.permute.xlu0 %588
        %v590 = vadd.f32 %v585, %v587
        %v591 = vadd.f32 %v584, %v589
        %592 = vrot.lane.b32.xlu0 %v590, 2
        %v593 = vpop.permute.xlu0 %592
        %594 = vrot.lane.b32.xlu0 %v591, 2
        %v595 = vpop.permute.xlu0 %594
        %v596 = vadd.f32 %v590, %v593
        %v597 = vadd.f32 %v591, %v595
        %598 = vrot.lane.b32.xlu0 %v596, 124
        %v599 = vpop.permute.xlu0 %598
        %600 = vrot.lane.b32.xlu0 %v597, 124
        %v601 = vpop.permute.xlu0 %600
        %v602 = vsub.f32 %v596, %v599
        %v603 = vsub.f32 %v597, %v601
        %v604 = vand.u32 2147483647, %v602
        %v605 = vand.u32 2147483647, %v603
        %v606 = vmax.f32 %v580, %v604
        %v607 = vmax.f32 %v581, %v605
        %v608 = vld [vmem:[#allocation6] sm:$0xff]
        %v609 = vld [vmem:[#allocation6 + $0x8] sm:$0xff]
        %v610 = vmul.f32 %v606, %v608
        %v611 = vmul.f32 %v607, %v609
        %v612 = vmul.f32 %v542, -2.1
        %v613 = vmul.f32 %v543, -2.1
        %v614 = vmul.f32 %v612, 1.442695
        %v615 = vpow.pop %v614
        %v616 = vmul.f32 %v613, 1.442695
        %v617 = vpow.pop %v616
        %v618 = vadd.f32 %v615, 1.0
        %v619 = vadd.f32 %v617, 1.0
        %v620 = vrcp.pop %v618
        %v621 = vmul.f32 1.0, %v620
        %v622 = vrcp.pop %v619
        %v623 = vmul.f32 1.0, %v622
        %v624 = vadd.f32 %v621, %v406
        %v625 = vadd.f32 %v623, %v407
        %v626 = vmul.f32 %v624, %v610
        %v627 = vmul.f32 %v625, %v611
        %628 = vrot.lane.b32.xlu0 %v416, 127
        %v629 = vpop.permute.xlu0 %628
        %630 = vrot.lane.b32.xlu0 %v417, 127
        %v631 = vpop.permute.xlu0 %630
        %v632 = vadd.f32 %v416, %v629
        %v633 = vadd.f32 %v417, %v631
        %634 = vrot.lane.b32.xlu0 %v426, 127
        %v635 = vpop.permute.xlu0 %634
        %636 = vrot.lane.b32.xlu0 %v427, 127
        %v637 = vpop.permute.xlu0 %636
        %v638 = vadd.f32 %v426, %v635
        %v639 = vadd.f32 %v427, %v637
        %v640 = vrot.slane %v632, 1
        %v641 = vrot.slane %v633, 1
        %v642 = vsel %vm277, %v640, %v641
        %v643 = vsel %vm277, %v641, %v640
        %v644 = vsub.f32 %v632, %v642
        %v645 = vsub.f32 %v633, %v643
        %v646 = vand.u32 2147483647, %v644
        %v647 = vand.u32 2147483647, %v645
        %v648 = vrot.slane %v638, 1
        %v649 = vrot.slane %v639, 1
        %v650 = vsel %vm277, %v648, %v649
        %v651 = vsel %vm277, %v649, %v648
        %v652 = vsub.f32 %v638, %v650
        %v653 = vsub.f32 %v639, %v651
        %v654 = vand.u32 2147483647, %v652
        %v655 = vand.u32 2147483647, %v653
        %v656 = vmul.f32 %v646, 2.0
        %v657 = vmul.f32 %v647, 2.0
        %v658 = vmul.f32 %v656, %v654
        %v659 = vmul.f32 %v657, %v655
        %v660 = vadd.f32 %v658, 0.00184
        %v661 = vadd.f32 %v659, 0.00184
        %v662 = vmul.f32 %v646, %v646
        %v663 = vmul.f32 %v647, %v647
        %v664 = vmul.f32 %v654, %v654
        %v665 = vmul.f32 %v655, %v655
        %v666 = vadd.f32 %v662, %v664
        %v667 = vadd.f32 %v663, %v665
        %v668 = vadd.f32 %v666, 0.00184
        %v669 = vadd.f32 %v667, 0.00184
        %v670 = vrcp.pop %v668
        %v671 = vmul.f32 %v660, %v670
        %v672 = vrcp.pop %v669
        %v673 = vmul.f32 %v661, %v672
        %674 = vrot.lane.b32.xlu0 %v632, 126
        %v675 = vpop.permute.xlu0 %674
        %676 = vrot.lane.b32.xlu0 %v633, 126
        %v677 = vpop.permute.xlu0 %676
        %v678 = vadd.f32 %v632, %v675
        %v679 = vadd.f32 %v633, %v677
        %680 = vrot.lane.b32.xlu0 %v638, 126
        %v681 = vpop.permute.xlu0 %680
        %682 = vrot.lane.b32.xlu0 %v639, 126
        %v683 = vpop.permute.xlu0 %682
        %v684 = vadd.f32 %v638, %v681
        %v685 = vadd.f32 %v639, %v683
        %686 = vrot.lane.b32.xlu0 %v678, 1
        %v687 = vpop.permute.xlu0 %686
        %688 = vrot.lane.b32.xlu0 %v679, 1
        %v689 = vpop.permute.xlu0 %688
        %v690 = vrot.slane %v687, 7
        %v691 = vrot.slane %v689, 7
        %v692 = vsel %vm489, %v690, %v691
        %v693 = vsel %vm489, %v691, %v690
        %v694 = vadd.f32 %v687, %v693
        %v695 = vadd.f32 %v689, %v692
        %v696 = vrot.slane %v694, 2
        %v697 = vrot.slane %v695, 2
        %v698 = vsel %vm476, %v696, %v697
        %v699 = vsel %vm476, %v697, %v696
        %v700 = vsub.f32 %v694, %v698
        %v701 = vsub.f32 %v695, %v699
        %v702 = vand.u32 2147483647, %v700
        %v703 = vand.u32 2147483647, %v701
        %704 = vrot.lane.b32.xlu0 %v684, 1
        %v705 = vpop.permute.xlu0 %704
        %706 = vrot.lane.b32.xlu0 %v685, 1
        %v707 = vpop.permute.xlu0 %706
        %v708 = vrot.slane %v705, 7
        %v709 = vrot.slane %v707, 7
        %v710 = vsel %vm489, %v708, %v709
        %v711 = vsel %vm489, %v709, %v708
        %v712 = vadd.f32 %v705, %v711
        %v713 = vadd.f32 %v707, %v710
        %v714 = vrot.slane %v712, 2
        %v715 = vrot.slane %v713, 2
        %v716 = vsel %vm476, %v714, %v715
        %v717 = vsel %vm476, %v715, %v714
        %v718 = vsub.f32 %v712, %v716
        %v719 = vsub.f32 %v713, %v717
        %v720 = vand.u32 2147483647, %v718
        %v721 = vand.u32 2147483647, %v719
        %v722 = vmul.f32 %v702, 2.0
        %v723 = vmul.f32 %v703, 2.0
        %v724 = vmul.f32 %v722, %v720
        %v725 = vmul.f32 %v723, %v721
        %v726 = vadd.f32 %v724, 0.00736
        %v727 = vadd.f32 %v725, 0.00736
        %v728 = vmul.f32 %v702, %v702
        %v729 = vmul.f32 %v703, %v703
        %v730 = vmul.f32 %v720, %v720
        %v731 = vmul.f32 %v721, %v721
        %v732 = vadd.f32 %v728, %v730
        %v733 = vadd.f32 %v729, %v731
        %v734 = vadd.f32 %v732, 0.00736
        %v735 = vadd.f32 %v733, 0.00736
        %v736 = vrcp.pop %v734
        %v737 = vmul.f32 %v726, %v736
        %v738 = vrcp.pop %v735
        %v739 = vmul.f32 %v727, %v738
        %v740 = vadd.f32 %v671, %v737
        %v741 = vadd.f32 %v673, %v739
        %742 = vrot.lane.b32.xlu0 %v678, 124
        %v743 = vpop.permute.xlu0 %742
        %744 = vrot.lane.b32.xlu0 %v679, 124
        %v745 = vpop.permute.xlu0 %744
        %v746 = vadd.f32 %v678, %v743
        %v747 = vadd.f32 %v679, %v745
        %748 = vrot.lane.b32.xlu0 %v684, 124
        %v749 = vpop.permute.xlu0 %748
        %750 = vrot.lane.b32.xlu0 %v685, 124
        %v751 = vpop.permute.xlu0 %750
        %v752 = vadd.f32 %v684, %v749
        %v753 = vadd.f32 %v685, %v751
        %754 = vrot.lane.b32.xlu0 %v746, 3
        %v755 = vpop.permute.xlu0 %754
        %756 = vrot.lane.b32.xlu0 %v747, 3
        %v757 = vpop.permute.xlu0 %756
        %v758 = vrot.slane %v755, 7
        %v759 = vrot.slane %v757, 7
        %v760 = vsel %vm489, %v758, %v759
        %v761 = vsel %vm489, %v759, %v758
        %v762 = vadd.f32 %v755, %v761
        %v763 = vadd.f32 %v757, %v760
        %v764 = vrot.slane %v762, 6
        %v765 = vrot.slane %v763, 6
        %vm766 = vcmp.lt.s32.totalorder %v276, 2
        %v767 = vsel %vm766, %v764, %v765
        %v768 = vsel %vm766, %v765, %v764
        %v769 = vadd.f32 %v762, %v768
        %v770 = vadd.f32 %v763, %v767
        %v771 = vrot.slane %v769, 4
        %v772 = vrot.slane %v770, 4
        %v773 = vsel %vm546, %v771, %v772
        %v774 = vsel %vm546, %v772, %v771
        %v775 = vsub.f32 %v769, %v773
        %v776 = vsub.f32 %v770, %v774
        %v777 = vand.u32 2147483647, %v775
        %v778 = vand.u32 2147483647, %v776
        %779 = vrot.lane.b32.xlu0 %v752, 3
        %v780 = vpop.permute.xlu0 %779
        %781 = vrot.lane.b32.xlu0 %v753, 3
        %v782 = vpop.permute.xlu0 %781
        %v783 = vrot.slane %v780, 7
        %v784 = vrot.slane %v782, 7
        %v785 = vsel %vm489, %v783, %v784
        %v786 = vsel %vm489, %v784, %v783
        %v787 = vadd.f32 %v780, %v786
        %v788 = vadd.f32 %v782, %v785
        %v789 = vrot.slane %v787, 6
        %v790 = vrot.slane %v788, 6
        %v791 = vsel %vm766, %v789, %v790
        %v792 = vsel %vm766, %v790, %v789
        %v793 = vadd.f32 %v787, %v792
        %v794 = vadd.f32 %v788, %v791
        %v795 = vrot.slane %v793, 4
        %v796 = vrot.slane %v794, 4
        %v797 = vsel %vm546, %v795, %v796
        %v798 = vsel %vm546, %v796, %v795
        %v799 = vsub.f32 %v793, %v797
        %v800 = vsub.f32 %v794, %v798
        %v801 = vand.u32 2147483647, %v799
        %v802 = vand.u32 2147483647, %v800
        %v803 = vmax.f32 %v777, %v801
        %v804 = vmax.f32 %v778, %v802
        %v805 = vmul.f32 %v803, %v608
        %v806 = vmul.f32 %v804, %v609
        %v807 = vmul.f32 %v740, -2.1
        %v808 = vmul.f32 %v741, -2.1
        %v809 = vmul.f32 %v807, 1.442695
        %v810 = vpow.pop %v809
        %v811 = vmul.f32 %v808, 1.442695
        %v812 = vpow.pop %v811
        %v813 = vadd.f32 %v810, 1.0
        %v814 = vadd.f32 %v812, 1.0
        %v815 = vrcp.pop %v813
        %v816 = vmul.f32 1.0, %v815
        %v817 = vrcp.pop %v814
        %v818 = vmul.f32 1.0, %v817
        %v819 = vadd.f32 %v816, %v406
        %v820 = vadd.f32 %v818, %v407
        %v821 = vmul.f32 %v819, %v805
        %v822 = vmul.f32 %v820, %v806
        %v823 = vadd.f32 %v626, %v821
        %v824 = vadd.f32 %v627, %v822
        %v825 = vadd.f32 %v610, %v805
        %v826 = vadd.f32 %v611, %v806
        %v827 = vadd.f32 %v823, %v824
        %v828 = vrot.slane %v827, 4
        %v829 = vadd.f32 %v827, %v828
        %v830 = vrot.slane %v829, 2
        %v831 = vadd.f32 %v829, %v830
        %v832 = vrot.slane %v831, 1
        %v833 = vadd.f32 %v831, %v832
        %v834 = vadd.f32 %v825, %v826
        %v835 = vrot.slane %v834, 4
        %v836 = vadd.f32 %v834, %v835
        %v837 = vrot.slane %v836, 2
        %v838 = vadd.f32 %v836, %v837
        %v839 = vrot.slane %v838, 1
        %v840 = vadd.f32 %v838, %v839
        %vm841 = vcmask 114688
        %v842 = vsel %vm841, %v833, 0.0
        %843 = vadd.xlane.f32.xlu0 %v842
        %v844 = vpop.xlane.xlu0 %843
        %v845 = vrot.slane %v844, 4
        %v846 = vadd.f32 %v844, %v845
        %v847 = vrot.slane %v846, 2
        %v848 = vadd.f32 %v846, %v847
        %v849 = vrot.slane %v848, 1
        %v850 = vadd.f32 %v848, %v849
        %s851 = vtos %v850
        %v852 = vstv %s851
        %v853 = vsel %vm841, %v840, 0.0
        %854 = vadd.xlane.f32.xlu0 %v853
        %v855 = vpop.xlane.xlu0 %854
        %v856 = vrot.slane %v855, 4
        %v857 = vadd.f32 %v855, %v856
        %v858 = vrot.slane %v857, 2
        %v859 = vadd.f32 %v857, %v858
        %v860 = vrot.slane %v859, 1
        %v861 = vadd.f32 %v859, %v860
        %s862 = vtos %v861
        %v863 = vstv %s862
        %v864 = vmul.f32 %v863, 1.5
        %v865 = vadd.f32 %v864, 1e-30
        %v866 = vrcp.pop %v865
        %v867 = vmul.f32 %v852, %v866
        %v868 = vmax.f32 %v867, 1e-06
        %v869 = vmin.f32 %v868, 0.999999
        %v870 = vsub.f32 1.0, %v869
        %v871 = vrcp.pop %v870
        %v872 = vmul.f32 %v869, %v871
        %v873 = vlog2.pop %v872
        %v874 = vmul.f32 %v873, 0.6931472
        %v875 = vmul.f32 %v874, 0.23809524
        %v876 = vmul.f32 %v875, %v875
        %vm877 = vcmask 0
        %878 = vst.msk [vmem:[%s240] sm:$0x1] %vm877, %v876
        %p879 = scmp.lt.s32.totalorder %s20, 1
        %s880 = scalar_select %p879, %s20, 1
        %s881 = scalar_lea.vmem %s3, %s880
        // Predicated region
        $region45: #{tpu_custom_call.1} parent=31 // pred_check
          %p882 = pneg %p111
        $region46: #{tpu_custom_call.1} parent=31 // pred_check_branch
          %884 = sbr.rel (%p882) target = $region48
        $region47: #{tpu_custom_call.1} parent=31 // pred_region
          _
        $region48: #{tpu_custom_call.1} parent=31 // pred_fallthru
          _
      $region32: #{tpu_custom_call.1} parent=5 // pred_fallthru
        _
      %p885 = scmp.le.s32.totalorder 2, %s15
      // Predicated region
      $region49: #{tpu_custom_call.1} parent=5 // pred_check
        %p886 = pneg %p885
      $region50: #{tpu_custom_call.1} parent=5 // pred_check_branch
        %888 = sbr.rel (%p886) target = $region52
      $region51: #{tpu_custom_call.1} parent=5 // pred_region
        %s889 = ssub.s32 %s15, 2
        // Predicated region
        $region53: #{tpu_custom_call.1} parent=51 // pred_check
          %p890 = pneg %p117
        $region54: #{tpu_custom_call.1} parent=51 // pred_check_branch
          %892 = sbr.rel (%p890) target = $region56
        $region55: #{tpu_custom_call.1} parent=51 // pred_region
          %p893 = scmp.lt.s32.totalorder %s21, 1
          %s894 = scalar_select %p893, %s21, 1
          %s895 = scalar_lea.vmem %s3, %s894
        $region56: #{tpu_custom_call.1} parent=51 // pred_fallthru
          _
      $region52: #{tpu_custom_call.1} parent=5 // pred_fallthru
        _
    $region6: #{tpu_custom_call.1} parent=1 // loop_footer
      %s19 = sadd.s32 1, %s15
    $region7: #{tpu_custom_call.1} parent=1 // loop_footer_branch
      %14 = sbr.rel target = $region3
    $region8: #{tpu_custom_call.1} parent=1 // loop_exit
      _
    %896 = vsyncpa [#allocation3], 1
    %s897 = scalar_lea.sflag [#allocation3], 1
    %898 = vsyncpa %s897, 1
    %899 = vsyncpa [#allocation5], 1
    %s900 = scalar_lea.sflag [#allocation5], 1
    %901 = vsyncpa %s900, 1

</llo_original>
